<compile_context>
chip_gen: v7x
topology: tpu7x:2x2x1
jax: 0.10.0
libtpu: 0.0.40
codegen_flags: <defaults>
</compile_context>

<pallas_src>
import functools

import jax
import jax.numpy as jnp
from jax.experimental import pallas as pl
from jax.experimental.pallas import tpu as pltpu


def fused_two_conv_kernel(x_ref, w1_ref, b1_ref, w2_ref, b2_ref, o_ref,
                          xpad_ref, xcol_ref, ypad_ref, ycol_ref,
                          *, H, W, KH, KW, B):
    """Fused (conv3x3 + bias + ReLU) x2 for B batch images per grid step.

    Layouts (all lane-dense: minor dim = H*W, a multiple of 128):
      x_ref    : (B, Cin,  H*W)      input images, channels-first, flat spatial
      w1_ref   : (Cmid, KH*KW*Cin)   conv1 weights, taps stacked in contraction
      b1_ref   : (Cmid, 1)
      w2_ref   : (Cout, KH*KW*Cmid)
      b2_ref   : (Cout, 1)
      o_ref    : (B, Cout, H*W)
      xpad_ref : (Cin,  H*W + 2*P)   VMEM zero-margin flat image (P = W+1)
      xcol_ref : (KH*KW*Cin,  H*W)   VMEM im2col slab for conv1
      ypad_ref : (Cmid, H*W + 2*P)   VMEM zero-margin conv1 activation
      ycol_ref : (KH*KW*Cmid, H*W)   VMEM im2col slab for conv2
    """
    HW = H * W
    P = (KH // 2) * W + (KW // 2)   # largest flat-index tap offset

    # --- per-step init: zero ONLY the two pad margins of each padded slab.
    # Correctness of the 'same' padding relies on the body writing exactly
    # [P : P+HW] below and never touching the margins; do not widen it.
    for pad in (xpad_ref, ypad_ref):
        edge = jnp.zeros((pad.shape[0], P), pad.dtype)
        pad[:, :P] = edge
        pad[:, P + HW:] = edge

    # Hoisted horizontal-wrap masks: one per nonzero dw, built once and
    # reused for every dh tap, both convs, and all B images.  (Padding along
    # H is handled by the zero margins; padding along W needs these masks to
    # kill taps that wrapped into the neighbouring row.)
    col_id = jax.lax.broadcasted_iota(jnp.int32, (1, HW), 1) % W
    wrap_mask = {
        dw: (col_id >= -dw) if dw < 0 else (col_id < W - dw)
        for dw in range(-(KW // 2), KW // 2 + 1) if dw != 0
    }

    def conv_taps(img, pad_ref, col_ref):
        """img: (C, H*W) -> fills col_ref with (KH*KW*C, H*W) im2col taps."""
        C = img.shape[0]
        pad_ref[:, P:P + HW] = img          # middle write only; margins stay 0
        t = 0
        for dh in range(-(KH // 2), KH // 2 + 1):
            for dw in range(-(KW // 2), KW // 2 + 1):
                d = dh * W + dw
                xs = pad_ref[:, P + d:P + d + HW]     # xs[:, p] = img[:, p+d]
                if dw != 0:                           # zero row wrap-around
                    xs = jnp.where(wrap_mask[dw], xs, 0.0)
                col_ref[t * C:(t + 1) * C, :] = xs
                t += 1
        return col_ref[...]                           # (KH*KW*C, H*W)

    # Static (unrolled) loop over the B images handled by this grid step; the
    # same pad/im2col slabs are reused image after image.
    for b in range(B):
        # conv1 + bias + ReLU: one MXU matmul, K = KH*KW*Cin.
        y = jnp.dot(w1_ref[...], conv_taps(x_ref[b], xpad_ref, xcol_ref),
                    preferred_element_type=jnp.float32)
        y = jnp.maximum(y + b1_ref[...], 0.0)         # (Cmid, H*W), stays on-chip

        # conv2 + bias + ReLU: one MXU matmul, K = KH*KW*Cmid.
        z = jnp.dot(w2_ref[...], conv_taps(y, ypad_ref, ycol_ref),
                    preferred_element_type=jnp.float32)
        z = jnp.maximum(z + b2_ref[...], 0.0)

        o_ref[b] = z.astype(o_ref.dtype)              # lane-dense (Cout, H*W) store


def _tensorcores_per_chip():
    """Perf-only heuristic: how many TensorCores share the grid under
    dimension_semantics=("parallel",).  A wrong guess only costs speed."""
    try:
        kind = jax.devices()[0].device_kind.lower()
        return 2 if any(tag in kind for tag in ("v7", "v5p", "v4")) else 1
    except Exception:
        return 1


@jax.jit
def two_conv_forward(x_nchw, w1_oihw, b1, w2_oihw, b2):
    """TwoConv forward.  x: (N, Cin, H, W) NCHW, weights in PyTorch OIHW layout."""
    N, Cin, H, W = x_nchw.shape
    Cmid, _, KH, KW = w1_oihw.shape
    Cout = w2_oihw.shape[0]
    assert KH % 2 == 1 and KW % 2 == 1, "'same' padding assumes odd kernel size"
    HW = H * W
    P = (KH // 2) * W + (KW // 2)

    # Grid-step batching: one step per TensorCore when the batch divides
    # evenly (v7x: 2 steps -> both cores busy), otherwise the whole batch in
    # a single step (v5e/v6e: amortizes per-step overhead).
    tc = _tensorcores_per_chip()
    n_steps = tc if (tc > 1 and N % tc == 0 and N >= tc) else 1
    B = N // n_steps

    # Free reshape (no data movement): NCHW -> (N, C, H*W) lane-dense blocks.
    x_flat = x_nchw.reshape(N, Cin, HW)

    # Re-pack weights so the KH*KW taps sit in the matmul contraction dim, in
    # the same (tap-major, channel-minor) order the kernel writes its im2col.
    w1s = jnp.transpose(w1_oihw, (0, 2, 3, 1)).reshape(Cmid, KH * KW * Cin)
    w2s = jnp.transpose(w2_oihw, (0, 2, 3, 1)).reshape(Cout, KH * KW * Cmid)
    b1c = b1.reshape(Cmid, 1)
    b2c = b2.reshape(Cout, 1)

    kernel = functools.partial(fused_two_conv_kernel, H=H, W=W, KH=KH, KW=KW, B=B)

    out_flat = pl.pallas_call(
        kernel,
        out_shape=jax.ShapeDtypeStruct((N, Cout, HW), jnp.float32),
        grid=(n_steps,),
        in_specs=[
            pl.BlockSpec((B, Cin, HW), lambda n: (n, 0, 0)),
            pl.BlockSpec((Cmid, KH * KW * Cin), lambda n: (0, 0)),
            pl.BlockSpec((Cmid, 1), lambda n: (0, 0)),
            pl.BlockSpec((Cout, KH * KW * Cmid), lambda n: (0, 0)),
            pl.BlockSpec((Cout, 1), lambda n: (0, 0)),
        ],
        out_specs=pl.BlockSpec((B, Cout, HW), lambda n: (n, 0, 0)),
        scratch_shapes=[
            pltpu.VMEM((Cin, HW + 2 * P), jnp.float32),
            pltpu.VMEM((KH * KW * Cin, HW), jnp.float32),
            pltpu.VMEM((Cmid, HW + 2 * P), jnp.float32),
            pltpu.VMEM((KH * KW * Cmid, HW), jnp.float32),
        ],
        compiler_params=pltpu.CompilerParams(
            dimension_semantics=("parallel",)),
    )(x_flat, w1s, b1c, w2s, b2c)

    # Free reshape back to the PyTorch NCHW output convention.
    return out_flat.reshape(N, Cout, H, W)


def init_conv_params(key, cin, cout, k):
    """PyTorch Conv2d default init (uniform +/- 1/sqrt(fan_in)), OIHW layout."""
    kw_, kb_ = jax.random.split(key)
    bound = 1.0 / float(cin * k * k) ** 0.5
    w = jax.random.uniform(kw_, (cout, cin, k, k), jnp.float32, -bound, bound)
    b = jax.random.uniform(kb_, (cout,), jnp.float32, -bound, bound)
    return w, b


def reference_forward(x_nchw, w1, b1, w2, b2):
    """Plain-JAX NCHW/OIHW reference (lax.conv) for the correctness check."""
    dn = ('NCHW', 'OIHW', 'NCHW')
    y = jax.lax.conv_general_dilated(x_nchw, w1, (1, 1), 'SAME',
                                     dimension_numbers=dn)
    y = jnp.maximum(y + b1.reshape(1, -1, 1, 1), 0.0)
    y = jax.lax.conv_general_dilated(y, w2, (1, 1), 'SAME',
                                     dimension_numbers=dn)
    y = jnp.maximum(y + b2.reshape(1, -1, 1, 1), 0.0)
    return y


if __name__ == "__main__":
    # Shapes consistent with TwoConv(in_channels=4, out_channels=8), 16x16 image.
    N, Cin, Cout, H, W, K = 2, 4, 8, 16, 16, 3

    key = jax.random.PRNGKey(0)
    kx, k1, k2 = jax.random.split(key, 3)

    x = jax.random.normal(kx, (N, Cin, H, W), jnp.float32)   # NCHW, like PyTorch
    w1, b1 = init_conv_params(k1, Cin, Cout, K)              # OIHW, like PyTorch
    w2, b2 = init_conv_params(k2, Cout, Cout, K)

    out = two_conv_forward(x, w1, b1, w2, b2)
    out = jax.block_until_ready(out)

    ref = reference_forward(x, w1, b1, w2, b2)
    assert out.shape == (N, Cout, H, W)
    assert jnp.allclose(out, ref, atol=1e-5, rtol=1e-5), \
        float(jnp.max(jnp.abs(out - ref)))

    print("KERNEL_OK")
</pallas_src>

<mosaic_0001>
module attributes {stable_mosaic.version = 11 : i64} {
  func.func @fused_two_conv_kernel(%arg0: i32, %arg1: memref<2x4x256xf32, #tpu.memory_space<vmem>>, %arg2: memref<8x36xf32, #tpu.memory_space<vmem>>, %arg3: memref<8x1xf32, #tpu.memory_space<vmem>>, %arg4: memref<8x72xf32, #tpu.memory_space<vmem>>, %arg5: memref<8x1xf32, #tpu.memory_space<vmem>>, %arg6: memref<2x8x256xf32, #tpu.memory_space<vmem>>, %arg7: memref<4x290xf32, #tpu.memory_space<vmem>>, %arg8: memref<36x256xf32, #tpu.memory_space<vmem>>, %arg9: memref<8x290xf32, #tpu.memory_space<vmem>>, %arg10: memref<72x256xf32, #tpu.memory_space<vmem>>) attributes {dimension_semantics = [#tpu.dimension_semantics<parallel>], iteration_bounds = array<i64: 1>, scalar_prefetch = 0 : i64, scratch_operands = 4 : i64, tpu.core_type = #tpu.core_type<tc>, window_params = [{transform_indices = @transform_0, window_bounds = array<i64: 2, 4, 256>}, {pipeline_mode = #tpu.pipeline_mode<synchronous>, transform_indices = @transform_1, window_bounds = array<i64: 8, 36>}, {pipeline_mode = #tpu.pipeline_mode<synchronous>, transform_indices = @transform_2, window_bounds = array<i64: 8, 1>}, {pipeline_mode = #tpu.pipeline_mode<synchronous>, transform_indices = @transform_3, window_bounds = array<i64: 8, 72>}, {pipeline_mode = #tpu.pipeline_mode<synchronous>, transform_indices = @transform_4, window_bounds = array<i64: 8, 1>}, {transform_indices = @transform_5, window_bounds = array<i64: 2, 8, 256>}]} {
    %cst = arith.constant 0.000000e+00 : f32
    %0 = vector.broadcast %cst : f32 to vector<4x17xf32>
    %c0 = arith.constant 0 : index
    %c0_0 = arith.constant 0 : index
    %1 = vector.load %arg7[%c0, %c0_0] : memref<4x290xf32, #tpu.memory_space<vmem>>, vector<4x17xf32>
    tpu.vector_store %arg7[%c0, %c0_0], %0 {strides = array<i32>} : memref<4x290xf32, #tpu.memory_space<vmem>>, vector<4x17xf32>,
    %c0_1 = arith.constant 0 : index
    %c273 = arith.constant 273 : index
    %2 = vector.load %arg7[%c0_1, %c273] : memref<4x290xf32, #tpu.memory_space<vmem>>, vector<4x17xf32>
    tpu.vector_store %arg7[%c0_1, %c273], %0 {strides = array<i32>} : memref<4x290xf32, #tpu.memory_space<vmem>>, vector<4x17xf32>,
    %cst_2 = arith.constant 0.000000e+00 : f32
    %3 = vector.broadcast %cst_2 : f32 to vector<8x17xf32>
    %c0_3 = arith.constant 0 : index
    %c0_4 = arith.constant 0 : index
    %4 = vector.load %arg9[%c0_3, %c0_4] : memref<8x290xf32, #tpu.memory_space<vmem>>, vector<8x17xf32>
    tpu.vector_store %arg9[%c0_3, %c0_4], %3 {strides = array<i32>} : memref<8x290xf32, #tpu.memory_space<vmem>>, vector<8x17xf32>,
    %c0_5 = arith.constant 0 : index
    %c273_6 = arith.constant 273 : index
    %5 = vector.load %arg9[%c0_5, %c273_6] : memref<8x290xf32, #tpu.memory_space<vmem>>, vector<8x17xf32>
    tpu.vector_store %arg9[%c0_5, %c273_6], %3 {strides = array<i32>} : memref<8x290xf32, #tpu.memory_space<vmem>>, vector<8x17xf32>,
    %6 = tpu.iota {dimensions = array<i32: 1>} : vector<1x256xi32>
    %c16_i32 = arith.constant 16 : i32
    %c0_i32 = arith.constant 0 : i32
    %7 = arith.cmpi eq, %c16_i32, %c0_i32 : i32
    %c1_i32 = arith.constant 1 : i32
    %8 = arith.select %7, %c1_i32, %c16_i32 : i32
    %9 = vector.broadcast %8 : i32 to vector<1x256xi32>
    %10 = arith.remsi %6, %9 : vector<1x256xi32>
    %c0_i32_7 = arith.constant 0 : i32
    %11 = vector.broadcast %c0_i32_7 : i32 to vector<1x256xi32>
    %12 = arith.cmpi ne, %10, %11 : vector<1x256xi32>
    %c0_i32_8 = arith.constant 0 : i32
    %13 = vector.broadcast %c0_i32_8 : i32 to vector<1x256xi32>
    %14 = arith.cmpi slt, %10, %13 : vector<1x256xi32>
    %c0_i32_9 = arith.constant 0 : i32
    %15 = arith.cmpi slt, %8, %c0_i32_9 : i32
    %16 = vector.broadcast %15 : i1 to vector<1x256xi1>
    %17 = vector.broadcast %16 : vector<1x256xi1> to vector<1x256xi1>
    %18 = arith.xori %14, %17 : vector<1x256xi1>
    %19 = arith.andi %18, %12 : vector<1x256xi1>
    %20 = vector.broadcast %8 : i32 to vector<1x256xi32>
    %21 = arith.addi %10, %20 : vector<1x256xi32>
    %22 = arith.select %19, %21, %10 : vector<1x256xi1>, vector<1x256xi32>
    %c1_i32_10 = arith.constant 1 : i32
    %23 = vector.broadcast %c1_i32_10 : i32 to vector<1x256xi32>
    %24 = arith.cmpi sge, %22, %23 : vector<1x256xi32>
    %c15_i32 = arith.constant 15 : i32
    %25 = vector.broadcast %c15_i32 : i32 to vector<1x256xi32>
    %26 = arith.cmpi slt, %22, %25 : vector<1x256xi32>
    %c0_11 = arith.constant 0 : index
    %c0_12 = arith.constant 0 : index
    %27 = vector.load %arg2[%c0_11, %c0_12] : memref<8x36xf32, #tpu.memory_space<vmem>>, vector<8x36xf32>
    %c0_13 = arith.constant 0 : index
    %c0_14 = arith.constant 0 : index
    %c0_15 = arith.constant 0 : index
    %28 = vector.load %arg1[%c0_13, %c0_14, %c0_15] : memref<2x4x256xf32, #tpu.memory_space<vmem>>, vector<1x4x256xf32>
    %29 = vector.shape_cast %28 : vector<1x4x256xf32> to vector<4x256xf32>
    %c0_16 = arith.constant 0 : index
    %c17 = arith.constant 17 : index
    %30 = vector.load %arg7[%c0_16, %c17] : memref<4x290xf32, #tpu.memory_space<vmem>>, vector<4x256xf32>
    tpu.vector_store %arg7[%c0_16, %c17], %29 {strides = array<i32>} : memref<4x290xf32, #tpu.memory_space<vmem>>, vector<4x256xf32>,
    %c0_17 = arith.constant 0 : index
    %c0_18 = arith.constant 0 : index
    %31 = vector.load %arg7[%c0_17, %c0_18] : memref<4x290xf32, #tpu.memory_space<vmem>>, vector<4x256xf32>
    %cst_19 = arith.constant 0.000000e+00 : f32
    %32 = vector.shape_cast %24 : vector<1x256xi1> to vector<1x256xi1>
    %33 = vector.broadcast %32 : vector<1x256xi1> to vector<4x256xi1>
    %34 = vector.broadcast %cst_19 : f32 to vector<4x256xf32>
    %35 = arith.select %33, %31, %34 : vector<4x256xi1>, vector<4x256xf32>
    %c0_20 = arith.constant 0 : index
    %c0_21 = arith.constant 0 : index
    %36 = vector.load %arg8[%c0_20, %c0_21] : memref<36x256xf32, #tpu.memory_space<vmem>>, vector<4x256xf32>
    tpu.vector_store %arg8[%c0_20, %c0_21], %35 {strides = array<i32>} : memref<36x256xf32, #tpu.memory_space<vmem>>, vector<4x256xf32>,
    %c0_22 = arith.constant 0 : index
    %c1 = arith.constant 1 : index
    %37 = vector.load %arg7[%c0_22, %c1] : memref<4x290xf32, #tpu.memory_space<vmem>>, vector<4x256xf32>
    %c4 = arith.constant 4 : index
    %c0_23 = arith.constant 0 : index
    %38 = vector.load %arg8[%c4, %c0_23] : memref<36x256xf32, #tpu.memory_space<vmem>>, vector<4x256xf32>
    tpu.vector_store %arg8[%c4, %c0_23], %37 {strides = array<i32>} : memref<36x256xf32, #tpu.memory_space<vmem>>, vector<4x256xf32>,
    %c0_24 = arith.constant 0 : index
    %c2 = arith.constant 2 : index
    %39 = vector.load %arg7[%c0_24, %c2] : memref<4x290xf32, #tpu.memory_space<vmem>>, vector<4x256xf32>
    %cst_25 = arith.constant 0.000000e+00 : f32
    %40 = vector.shape_cast %26 : vector<1x256xi1> to vector<1x256xi1>
    %41 = vector.broadcast %40 : vector<1x256xi1> to vector<4x256xi1>
    %42 = vector.broadcast %cst_25 : f32 to vector<4x256xf32>
    %43 = arith.select %41, %39, %42 : vector<4x256xi1>, vector<4x256xf32>
    %c8 = arith.constant 8 : index
    %c0_26 = arith.constant 0 : index
    %44 = vector.load %arg8[%c8, %c0_26] : memref<36x256xf32, #tpu.memory_space<vmem>>, vector<4x256xf32>
    tpu.vector_store %arg8[%c8, %c0_26], %43 {strides = array<i32>} : memref<36x256xf32, #tpu.memory_space<vmem>>, vector<4x256xf32>,
    %c0_27 = arith.constant 0 : index
    %c16 = arith.constant 16 : index
    %45 = vector.load %arg7[%c0_27, %c16] : memref<4x290xf32, #tpu.memory_space<vmem>>, vector<4x256xf32>
    %cst_28 = arith.constant 0.000000e+00 : f32
    %46 = vector.shape_cast %24 : vector<1x256xi1> to vector<1x256xi1>
    %47 = vector.broadcast %46 : vector<1x256xi1> to vector<4x256xi1>
    %48 = vector.broadcast %cst_28 : f32 to vector<4x256xf32>
    %49 = arith.select %47, %45, %48 : vector<4x256xi1>, vector<4x256xf32>
    %c12 = arith.constant 12 : index
    %c0_29 = arith.constant 0 : index
    %50 = vector.load %arg8[%c12, %c0_29] : memref<36x256xf32, #tpu.memory_space<vmem>>, vector<4x256xf32>
    tpu.vector_store %arg8[%c12, %c0_29], %49 {strides = array<i32>} : memref<36x256xf32, #tpu.memory_space<vmem>>, vector<4x256xf32>,
    %c0_30 = arith.constant 0 : index
    %c17_31 = arith.constant 17 : index
    %51 = vector.load %arg7[%c0_30, %c17_31] : memref<4x290xf32, #tpu.memory_space<vmem>>, vector<4x256xf32>
    %c16_32 = arith.constant 16 : index
    %c0_33 = arith.constant 0 : index
    %52 = vector.load %arg8[%c16_32, %c0_33] : memref<36x256xf32, #tpu.memory_space<vmem>>, vector<4x256xf32>
    tpu.vector_store %arg8[%c16_32, %c0_33], %51 {strides = array<i32>} : memref<36x256xf32, #tpu.memory_space<vmem>>, vector<4x256xf32>,
    %c0_34 = arith.constant 0 : index
    %c18 = arith.constant 18 : index
    %53 = vector.load %arg7[%c0_34, %c18] : memref<4x290xf32, #tpu.memory_space<vmem>>, vector<4x256xf32>
    %cst_35 = arith.constant 0.000000e+00 : f32
    %54 = vector.shape_cast %26 : vector<1x256xi1> to vector<1x256xi1>
    %55 = vector.broadcast %54 : vector<1x256xi1> to vector<4x256xi1>
    %56 = vector.broadcast %cst_35 : f32 to vector<4x256xf32>
    %57 = arith.select %55, %53, %56 : vector<4x256xi1>, vector<4x256xf32>
    %c20 = arith.constant 20 : index
    %c0_36 = arith.constant 0 : index
    %58 = vector.load %arg8[%c20, %c0_36] : memref<36x256xf32, #tpu.memory_space<vmem>>, vector<4x256xf32>
    tpu.vector_store %arg8[%c20, %c0_36], %57 {strides = array<i32>} : memref<36x256xf32, #tpu.memory_space<vmem>>, vector<4x256xf32>,
    %c0_37 = arith.constant 0 : index
    %c32 = arith.constant 32 : index
    %59 = vector.load %arg7[%c0_37, %c32] : memref<4x290xf32, #tpu.memory_space<vmem>>, vector<4x256xf32>
    %cst_38 = arith.constant 0.000000e+00 : f32
    %60 = vector.shape_cast %24 : vector<1x256xi1> to vector<1x256xi1>
    %61 = vector.broadcast %60 : vector<1x256xi1> to vector<4x256xi1>
    %62 = vector.broadcast %cst_38 : f32 to vector<4x256xf32>
    %63 = arith.select %61, %59, %62 : vector<4x256xi1>, vector<4x256xf32>
    %c24 = arith.constant 24 : index
    %c0_39 = arith.constant 0 : index
    %64 = vector.load %arg8[%c24, %c0_39] : memref<36x256xf32, #tpu.memory_space<vmem>>, vector<4x256xf32>
    tpu.vector_store %arg8[%c24, %c0_39], %63 {strides = array<i32>} : memref<36x256xf32, #tpu.memory_space<vmem>>, vector<4x256xf32>,
    %c0_40 = arith.constant 0 : index
    %c33 = arith.constant 33 : index
    %65 = vector.load %arg7[%c0_40, %c33] : memref<4x290xf32, #tpu.memory_space<vmem>>, vector<4x256xf32>
    %c28 = arith.constant 28 : index
    %c0_41 = arith.constant 0 : index
    %66 = vector.load %arg8[%c28, %c0_41] : memref<36x256xf32, #tpu.memory_space<vmem>>, vector<4x256xf32>
    tpu.vector_store %arg8[%c28, %c0_41], %65 {strides = array<i32>} : memref<36x256xf32, #tpu.memory_space<vmem>>, vector<4x256xf32>,
    %c0_42 = arith.constant 0 : index
    %c34 = arith.constant 34 : index
    %67 = vector.load %arg7[%c0_42, %c34] : memref<4x290xf32, #tpu.memory_space<vmem>>, vector<4x256xf32>
    %cst_43 = arith.constant 0.000000e+00 : f32
    %68 = vector.shape_cast %26 : vector<1x256xi1> to vector<1x256xi1>
    %69 = vector.broadcast %68 : vector<1x256xi1> to vector<4x256xi1>
    %70 = vector.broadcast %cst_43 : f32 to vector<4x256xf32>
    %71 = arith.select %69, %67, %70 : vector<4x256xi1>, vector<4x256xf32>
    %c32_44 = arith.constant 32 : index
    %c0_45 = arith.constant 0 : index
    %72 = vector.load %arg8[%c32_44, %c0_45] : memref<36x256xf32, #tpu.memory_space<vmem>>, vector<4x256xf32>
    tpu.vector_store %arg8[%c32_44, %c0_45], %71 {strides = array<i32>} : memref<36x256xf32, #tpu.memory_space<vmem>>, vector<4x256xf32>,
    %c0_46 = arith.constant 0 : index
    %c0_47 = arith.constant 0 : index
    %73 = vector.load %arg8[%c0_46, %c0_47] : memref<36x256xf32, #tpu.memory_space<vmem>>, vector<36x256xf32>
    %cst_48 = arith.constant dense<0.000000e+00> : vector<8x256xf32>
    %74 = tpu.matmul %27, %73, %cst_48 {dimension_numbers = #tpu.dot_dimension_numbers<[1], [0], [0], [1], [0, 0, 1, 1], [], []>} : vector<8x36xf32>, vector<36x256xf32>, vector<8x256xf32> -> vector<8x256xf32>
    %c0_49 = arith.constant 0 : index
    %c0_50 = arith.constant 0 : index
    %75 = vector.load %arg3[%c0_49, %c0_50] : memref<8x1xf32, #tpu.memory_space<vmem>>, vector<8x1xf32>
    %76 = vector.broadcast %75 : vector<8x1xf32> to vector<8x256xf32>
    %77 = arith.addf %74, %76 : vector<8x256xf32>
    %cst_51 = arith.constant 0.000000e+00 : f32
    %78 = vector.broadcast %cst_51 : f32 to vector<8x256xf32>
    %79 = arith.maximumf %77, %78 : vector<8x256xf32>
    %c0_52 = arith.constant 0 : index
    %c0_53 = arith.constant 0 : index
    %80 = vector.load %arg4[%c0_52, %c0_53] : memref<8x72xf32, #tpu.memory_space<vmem>>, vector<8x72xf32>
    %c0_54 = arith.constant 0 : index
    %c17_55 = arith.constant 17 : index
    %81 = vector.load %arg9[%c0_54, %c17_55] : memref<8x290xf32, #tpu.memory_space<vmem>>, vector<8x256xf32>
    tpu.vector_store %arg9[%c0_54, %c17_55], %79 {strides = array<i32>} : memref<8x290xf32, #tpu.memory_space<vmem>>, vector<8x256xf32>,
    %c0_56 = arith.constant 0 : index
    %c0_57 = arith.constant 0 : index
    %82 = vector.load %arg9[%c0_56, %c0_57] : memref<8x290xf32, #tpu.memory_space<vmem>>, vector<8x256xf32>
    %cst_58 = arith.constant 0.000000e+00 : f32
    %83 = vector.shape_cast %24 : vector<1x256xi1> to vector<1x256xi1>
    %84 = vector.broadcast %83 : vector<1x256xi1> to vector<8x256xi1>
    %85 = vector.broadcast %cst_58 : f32 to vector<8x256xf32>
    %86 = arith.select %84, %82, %85 : vector<8x256xi1>, vector<8x256xf32>
    %c0_59 = arith.constant 0 : index
    %c0_60 = arith.constant 0 : index
    %87 = vector.load %arg10[%c0_59, %c0_60] : memref<72x256xf32, #tpu.memory_space<vmem>>, vector<8x256xf32>
    tpu.vector_store %arg10[%c0_59, %c0_60], %86 {strides = array<i32>} : memref<72x256xf32, #tpu.memory_space<vmem>>, vector<8x256xf32>,
    %c0_61 = arith.constant 0 : index
    %c1_62 = arith.constant 1 : index
    %88 = vector.load %arg9[%c0_61, %c1_62] : memref<8x290xf32, #tpu.memory_space<vmem>>, vector<8x256xf32>
    %c8_63 = arith.constant 8 : index
    %c0_64 = arith.constant 0 : index
    %89 = vector.load %arg10[%c8_63, %c0_64] : memref<72x256xf32, #tpu.memory_space<vmem>>, vector<8x256xf32>
    tpu.vector_store %arg10[%c8_63, %c0_64], %88 {strides = array<i32>} : memref<72x256xf32, #tpu.memory_space<vmem>>, vector<8x256xf32>,
    %c0_65 = arith.constant 0 : index
    %c2_66 = arith.constant 2 : index
    %90 = vector.load %arg9[%c0_65, %c2_66] : memref<8x290xf32, #tpu.memory_space<vmem>>, vector<8x256xf32>
    %cst_67 = arith.constant 0.000000e+00 : f32
    %91 = vector.shape_cast %26 : vector<1x256xi1> to vector<1x256xi1>
    %92 = vector.broadcast %91 : vector<1x256xi1> to vector<8x256xi1>
    %93 = vector.broadcast %cst_67 : f32 to vector<8x256xf32>
    %94 = arith.select %92, %90, %93 : vector<8x256xi1>, vector<8x256xf32>
    %c16_68 = arith.constant 16 : index
    %c0_69 = arith.constant 0 : index
    %95 = vector.load %arg10[%c16_68, %c0_69] : memref<72x256xf32, #tpu.memory_space<vmem>>, vector<8x256xf32>
    tpu.vector_store %arg10[%c16_68, %c0_69], %94 {strides = array<i32>} : memref<72x256xf32, #tpu.memory_space<vmem>>, vector<8x256xf32>,
    %c0_70 = arith.constant 0 : index
    %c16_71 = arith.constant 16 : index
    %96 = vector.load %arg9[%c0_70, %c16_71] : memref<8x290xf32, #tpu.memory_space<vmem>>, vector<8x256xf32>
    %cst_72 = arith.constant 0.000000e+00 : f32
    %97 = vector.shape_cast %24 : vector<1x256xi1> to vector<1x256xi1>
    %98 = vector.broadcast %97 : vector<1x256xi1> to vector<8x256xi1>
    %99 = vector.broadcast %cst_72 : f32 to vector<8x256xf32>
    %100 = arith.select %98, %96, %99 : vector<8x256xi1>, vector<8x256xf32>
    %c24_73 = arith.constant 24 : index
    %c0_74 = arith.constant 0 : index
    %101 = vector.load %arg10[%c24_73, %c0_74] : memref<72x256xf32, #tpu.memory_space<vmem>>, vector<8x256xf32>
    tpu.vector_store %arg10[%c24_73, %c0_74], %100 {strides = array<i32>} : memref<72x256xf32, #tpu.memory_space<vmem>>, vector<8x256xf32>,
    %c0_75 = arith.constant 0 : index
    %c17_76 = arith.constant 17 : index
    %102 = vector.load %arg9[%c0_75, %c17_76] : memref<8x290xf32, #tpu.memory_space<vmem>>, vector<8x256xf32>
    %c32_77 = arith.constant 32 : index
    %c0_78 = arith.constant 0 : index
    %103 = vector.load %arg10[%c32_77, %c0_78] : memref<72x256xf32, #tpu.memory_space<vmem>>, vector<8x256xf32>
    tpu.vector_store %arg10[%c32_77, %c0_78], %102 {strides = array<i32>} : memref<72x256xf32, #tpu.memory_space<vmem>>, vector<8x256xf32>,
    %c0_79 = arith.constant 0 : index
    %c18_80 = arith.constant 18 : index
    %104 = vector.load %arg9[%c0_79, %c18_80] : memref<8x290xf32, #tpu.memory_space<vmem>>, vector<8x256xf32>
    %cst_81 = arith.constant 0.000000e+00 : f32
    %105 = vector.shape_cast %26 : vector<1x256xi1> to vector<1x256xi1>
    %106 = vector.broadcast %105 : vector<1x256xi1> to vector<8x256xi1>
    %107 = vector.broadcast %cst_81 : f32 to vector<8x256xf32>
    %108 = arith.select %106, %104, %107 : vector<8x256xi1>, vector<8x256xf32>
    %c40 = arith.constant 40 : index
    %c0_82 = arith.constant 0 : index
    %109 = vector.load %arg10[%c40, %c0_82] : memref<72x256xf32, #tpu.memory_space<vmem>>, vector<8x256xf32>
    tpu.vector_store %arg10[%c40, %c0_82], %108 {strides = array<i32>} : memref<72x256xf32, #tpu.memory_space<vmem>>, vector<8x256xf32>,
    %c0_83 = arith.constant 0 : index
    %c32_84 = arith.constant 32 : index
    %110 = vector.load %arg9[%c0_83, %c32_84] : memref<8x290xf32, #tpu.memory_space<vmem>>, vector<8x256xf32>
    %cst_85 = arith.constant 0.000000e+00 : f32
    %111 = vector.shape_cast %24 : vector<1x256xi1> to vector<1x256xi1>
    %112 = vector.broadcast %111 : vector<1x256xi1> to vector<8x256xi1>
    %113 = vector.broadcast %cst_85 : f32 to vector<8x256xf32>
    %114 = arith.select %112, %110, %113 : vector<8x256xi1>, vector<8x256xf32>
    %c48 = arith.constant 48 : index
    %c0_86 = arith.constant 0 : index
    %115 = vector.load %arg10[%c48, %c0_86] : memref<72x256xf32, #tpu.memory_space<vmem>>, vector<8x256xf32>
    tpu.vector_store %arg10[%c48, %c0_86], %114 {strides = array<i32>} : memref<72x256xf32, #tpu.memory_space<vmem>>, vector<8x256xf32>,
    %c0_87 = arith.constant 0 : index
    %c33_88 = arith.constant 33 : index
    %116 = vector.load %arg9[%c0_87, %c33_88] : memref<8x290xf32, #tpu.memory_space<vmem>>, vector<8x256xf32>
    %c56 = arith.constant 56 : index
    %c0_89 = arith.constant 0 : index
    %117 = vector.load %arg10[%c56, %c0_89] : memref<72x256xf32, #tpu.memory_space<vmem>>, vector<8x256xf32>
    tpu.vector_store %arg10[%c56, %c0_89], %116 {strides = array<i32>} : memref<72x256xf32, #tpu.memory_space<vmem>>, vector<8x256xf32>,
    %c0_90 = arith.constant 0 : index
    %c34_91 = arith.constant 34 : index
    %118 = vector.load %arg9[%c0_90, %c34_91] : memref<8x290xf32, #tpu.memory_space<vmem>>, vector<8x256xf32>
    %cst_92 = arith.constant 0.000000e+00 : f32
    %119 = vector.shape_cast %26 : vector<1x256xi1> to vector<1x256xi1>
    %120 = vector.broadcast %119 : vector<1x256xi1> to vector<8x256xi1>
    %121 = vector.broadcast %cst_92 : f32 to vector<8x256xf32>
    %122 = arith.select %120, %118, %121 : vector<8x256xi1>, vector<8x256xf32>
    %c64 = arith.constant 64 : index
    %c0_93 = arith.constant 0 : index
    %123 = vector.load %arg10[%c64, %c0_93] : memref<72x256xf32, #tpu.memory_space<vmem>>, vector<8x256xf32>
    tpu.vector_store %arg10[%c64, %c0_93], %122 {strides = array<i32>} : memref<72x256xf32, #tpu.memory_space<vmem>>, vector<8x256xf32>,
    %c0_94 = arith.constant 0 : index
    %c0_95 = arith.constant 0 : index
    %124 = vector.load %arg10[%c0_94, %c0_95] : memref<72x256xf32, #tpu.memory_space<vmem>>, vector<72x256xf32>
    %cst_96 = arith.constant dense<0.000000e+00> : vector<8x256xf32>
    %125 = tpu.matmul %80, %124, %cst_96 {dimension_numbers = #tpu.dot_dimension_numbers<[1], [0], [0], [1], [0, 0, 1, 1], [], []>} : vector<8x72xf32>, vector<72x256xf32>, vector<8x256xf32> -> vector<8x256xf32>
    %c0_97 = arith.constant 0 : index
    %c0_98 = arith.constant 0 : index
    %126 = vector.load %arg5[%c0_97, %c0_98] : memref<8x1xf32, #tpu.memory_space<vmem>>, vector<8x1xf32>
    %127 = vector.broadcast %126 : vector<8x1xf32> to vector<8x256xf32>
    %128 = arith.addf %125, %127 : vector<8x256xf32>
    %cst_99 = arith.constant 0.000000e+00 : f32
    %129 = vector.broadcast %cst_99 : f32 to vector<8x256xf32>
    %130 = arith.maximumf %128, %129 : vector<8x256xf32>
    %c0_100 = arith.constant 0 : index
    %c0_101 = arith.constant 0 : index
    %c0_102 = arith.constant 0 : index
    %131 = vector.load %arg6[%c0_100, %c0_101, %c0_102] : memref<2x8x256xf32, #tpu.memory_space<vmem>>, vector<1x8x256xf32>
    %132 = vector.shape_cast %131 : vector<1x8x256xf32> to vector<8x256xf32>
    %133 = vector.shape_cast %130 : vector<8x256xf32> to vector<1x8x256xf32>
    tpu.vector_store %arg6[%c0_100, %c0_101, %c0_102], %133 {strides = array<i32>} : memref<2x8x256xf32, #tpu.memory_space<vmem>>, vector<1x8x256xf32>,
    %c0_103 = arith.constant 0 : index
    %c0_104 = arith.constant 0 : index
    %134 = vector.load %arg2[%c0_103, %c0_104] : memref<8x36xf32, #tpu.memory_space<vmem>>, vector<8x36xf32>
    %c1_105 = arith.constant 1 : index
    %c0_106 = arith.constant 0 : index
    %c0_107 = arith.constant 0 : index
    %135 = vector.load %arg1[%c1_105, %c0_106, %c0_107] : memref<2x4x256xf32, #tpu.memory_space<vmem>>, vector<1x4x256xf32>
    %136 = vector.shape_cast %135 : vector<1x4x256xf32> to vector<4x256xf32>
    %c0_108 = arith.constant 0 : index
    %c17_109 = arith.constant 17 : index
    %137 = vector.load %arg7[%c0_108, %c17_109] : memref<4x290xf32, #tpu.memory_space<vmem>>, vector<4x256xf32>
    tpu.vector_store %arg7[%c0_108, %c17_109], %136 {strides = array<i32>} : memref<4x290xf32, #tpu.memory_space<vmem>>, vector<4x256xf32>,
    %c0_110 = arith.constant 0 : index
    %c0_111 = arith.constant 0 : index
    %138 = vector.load %arg7[%c0_110, %c0_111] : memref<4x290xf32, #tpu.memory_space<vmem>>, vector<4x256xf32>
    %cst_112 = arith.constant 0.000000e+00 : f32
    %139 = vector.shape_cast %24 : vector<1x256xi1> to vector<1x256xi1>
    %140 = vector.broadcast %139 : vector<1x256xi1> to vector<4x256xi1>
    %141 = vector.broadcast %cst_112 : f32 to vector<4x256xf32>
    %142 = arith.select %140, %138, %141 : vector<4x256xi1>, vector<4x256xf32>
    %c0_113 = arith.constant 0 : index
    %c0_114 = arith.constant 0 : index
    %143 = vector.load %arg8[%c0_113, %c0_114] : memref<36x256xf32, #tpu.memory_space<vmem>>, vector<4x256xf32>
    tpu.vector_store %arg8[%c0_113, %c0_114], %142 {strides = array<i32>} : memref<36x256xf32, #tpu.memory_space<vmem>>, vector<4x256xf32>,
    %c0_115 = arith.constant 0 : index
    %c1_116 = arith.constant 1 : index
    %144 = vector.load %arg7[%c0_115, %c1_116] : memref<4x290xf32, #tpu.memory_space<vmem>>, vector<4x256xf32>
    %c4_117 = arith.constant 4 : index
    %c0_118 = arith.constant 0 : index
    %145 = vector.load %arg8[%c4_117, %c0_118] : memref<36x256xf32, #tpu.memory_space<vmem>>, vector<4x256xf32>
    tpu.vector_store %arg8[%c4_117, %c0_118], %144 {strides = array<i32>} : memref<36x256xf32, #tpu.memory_space<vmem>>, vector<4x256xf32>,
    %c0_119 = arith.constant 0 : index
    %c2_120 = arith.constant 2 : index
    %146 = vector.load %arg7[%c0_119, %c2_120] : memref<4x290xf32, #tpu.memory_space<vmem>>, vector<4x256xf32>
    %cst_121 = arith.constant 0.000000e+00 : f32
    %147 = vector.shape_cast %26 : vector<1x256xi1> to vector<1x256xi1>
    %148 = vector.broadcast %147 : vector<1x256xi1> to vector<4x256xi1>
    %149 = vector.broadcast %cst_121 : f32 to vector<4x256xf32>
    %150 = arith.select %148, %146, %149 : vector<4x256xi1>, vector<4x256xf32>
    %c8_122 = arith.constant 8 : index
    %c0_123 = arith.constant 0 : index
    %151 = vector.load %arg8[%c8_122, %c0_123] : memref<36x256xf32, #tpu.memory_space<vmem>>, vector<4x256xf32>
    tpu.vector_store %arg8[%c8_122, %c0_123], %150 {strides = array<i32>} : memref<36x256xf32, #tpu.memory_space<vmem>>, vector<4x256xf32>,
    %c0_124 = arith.constant 0 : index
    %c16_125 = arith.constant 16 : index
    %152 = vector.load %arg7[%c0_124, %c16_125] : memref<4x290xf32, #tpu.memory_space<vmem>>, vector<4x256xf32>
    %cst_126 = arith.constant 0.000000e+00 : f32
    %153 = vector.shape_cast %24 : vector<1x256xi1> to vector<1x256xi1>
    %154 = vector.broadcast %153 : vector<1x256xi1> to vector<4x256xi1>
    %155 = vector.broadcast %cst_126 : f32 to vector<4x256xf32>
    %156 = arith.select %154, %152, %155 : vector<4x256xi1>, vector<4x256xf32>
    %c12_127 = arith.constant 12 : index
    %c0_128 = arith.constant 0 : index
    %157 = vector.load %arg8[%c12_127, %c0_128] : memref<36x256xf32, #tpu.memory_space<vmem>>, vector<4x256xf32>
    tpu.vector_store %arg8[%c12_127, %c0_128], %156 {strides = array<i32>} : memref<36x256xf32, #tpu.memory_space<vmem>>, vector<4x256xf32>,
    %c0_129 = arith.constant 0 : index
    %c17_130 = arith.constant 17 : index
    %158 = vector.load %arg7[%c0_129, %c17_130] : memref<4x290xf32, #tpu.memory_space<vmem>>, vector<4x256xf32>
    %c16_131 = arith.constant 16 : index
    %c0_132 = arith.constant 0 : index
    %159 = vector.load %arg8[%c16_131, %c0_132] : memref<36x256xf32, #tpu.memory_space<vmem>>, vector<4x256xf32>
    tpu.vector_store %arg8[%c16_131, %c0_132], %158 {strides = array<i32>} : memref<36x256xf32, #tpu.memory_space<vmem>>, vector<4x256xf32>,
    %c0_133 = arith.constant 0 : index
    %c18_134 = arith.constant 18 : index
    %160 = vector.load %arg7[%c0_133, %c18_134] : memref<4x290xf32, #tpu.memory_space<vmem>>, vector<4x256xf32>
    %cst_135 = arith.constant 0.000000e+00 : f32
    %161 = vector.shape_cast %26 : vector<1x256xi1> to vector<1x256xi1>
    %162 = vector.broadcast %161 : vector<1x256xi1> to vector<4x256xi1>
    %163 = vector.broadcast %cst_135 : f32 to vector<4x256xf32>
    %164 = arith.select %162, %160, %163 : vector<4x256xi1>, vector<4x256xf32>
    %c20_136 = arith.constant 20 : index
    %c0_137 = arith.constant 0 : index
    %165 = vector.load %arg8[%c20_136, %c0_137] : memref<36x256xf32, #tpu.memory_space<vmem>>, vector<4x256xf32>
    tpu.vector_store %arg8[%c20_136, %c0_137], %164 {strides = array<i32>} : memref<36x256xf32, #tpu.memory_space<vmem>>, vector<4x256xf32>,
    %c0_138 = arith.constant 0 : index
    %c32_139 = arith.constant 32 : index
    %166 = vector.load %arg7[%c0_138, %c32_139] : memref<4x290xf32, #tpu.memory_space<vmem>>, vector<4x256xf32>
    %cst_140 = arith.constant 0.000000e+00 : f32
    %167 = vector.shape_cast %24 : vector<1x256xi1> to vector<1x256xi1>
    %168 = vector.broadcast %167 : vector<1x256xi1> to vector<4x256xi1>
    %169 = vector.broadcast %cst_140 : f32 to vector<4x256xf32>
    %170 = arith.select %168, %166, %169 : vector<4x256xi1>, vector<4x256xf32>
    %c24_141 = arith.constant 24 : index
    %c0_142 = arith.constant 0 : index
    %171 = vector.load %arg8[%c24_141, %c0_142] : memref<36x256xf32, #tpu.memory_space<vmem>>, vector<4x256xf32>
    tpu.vector_store %arg8[%c24_141, %c0_142], %170 {strides = array<i32>} : memref<36x256xf32, #tpu.memory_space<vmem>>, vector<4x256xf32>,
    %c0_143 = arith.constant 0 : index
    %c33_144 = arith.constant 33 : index
    %172 = vector.load %arg7[%c0_143, %c33_144] : memref<4x290xf32, #tpu.memory_space<vmem>>, vector<4x256xf32>
    %c28_145 = arith.constant 28 : index
    %c0_146 = arith.constant 0 : index
    %173 = vector.load %arg8[%c28_145, %c0_146] : memref<36x256xf32, #tpu.memory_space<vmem>>, vector<4x256xf32>
    tpu.vector_store %arg8[%c28_145, %c0_146], %172 {strides = array<i32>} : memref<36x256xf32, #tpu.memory_space<vmem>>, vector<4x256xf32>,
    %c0_147 = arith.constant 0 : index
    %c34_148 = arith.constant 34 : index
    %174 = vector.load %arg7[%c0_147, %c34_148] : memref<4x290xf32, #tpu.memory_space<vmem>>, vector<4x256xf32>
    %cst_149 = arith.constant 0.000000e+00 : f32
    %175 = vector.shape_cast %26 : vector<1x256xi1> to vector<1x256xi1>
    %176 = vector.broadcast %175 : vector<1x256xi1> to vector<4x256xi1>
    %177 = vector.broadcast %cst_149 : f32 to vector<4x256xf32>
    %178 = arith.select %176, %174, %177 : vector<4x256xi1>, vector<4x256xf32>
    %c32_150 = arith.constant 32 : index
    %c0_151 = arith.constant 0 : index
    %179 = vector.load %arg8[%c32_150, %c0_151] : memref<36x256xf32, #tpu.memory_space<vmem>>, vector<4x256xf32>
    tpu.vector_store %arg8[%c32_150, %c0_151], %178 {strides = array<i32>} : memref<36x256xf32, #tpu.memory_space<vmem>>, vector<4x256xf32>,
    %c0_152 = arith.constant 0 : index
    %c0_153 = arith.constant 0 : index
    %180 = vector.load %arg8[%c0_152, %c0_153] : memref<36x256xf32, #tpu.memory_space<vmem>>, vector<36x256xf32>
    %cst_154 = arith.constant dense<0.000000e+00> : vector<8x256xf32>
    %181 = tpu.matmul %134, %180, %cst_154 {dimension_numbers = #tpu.dot_dimension_numbers<[1], [0], [0], [1], [0, 0, 1, 1], [], []>} : vector<8x36xf32>, vector<36x256xf32>, vector<8x256xf32> -> vector<8x256xf32>
    %c0_155 = arith.constant 0 : index
    %c0_156 = arith.constant 0 : index
    %182 = vector.load %arg3[%c0_155, %c0_156] : memref<8x1xf32, #tpu.memory_space<vmem>>, vector<8x1xf32>
    %183 = vector.broadcast %182 : vector<8x1xf32> to vector<8x256xf32>
    %184 = arith.addf %181, %183 : vector<8x256xf32>
    %cst_157 = arith.constant 0.000000e+00 : f32
    %185 = vector.broadcast %cst_157 : f32 to vector<8x256xf32>
    %186 = arith.maximumf %184, %185 : vector<8x256xf32>
    %c0_158 = arith.constant 0 : index
    %c0_159 = arith.constant 0 : index
    %187 = vector.load %arg4[%c0_158, %c0_159] : memref<8x72xf32, #tpu.memory_space<vmem>>, vector<8x72xf32>
    %c0_160 = arith.constant 0 : index
    %c17_161 = arith.constant 17 : index
    %188 = vector.load %arg9[%c0_160, %c17_161] : memref<8x290xf32, #tpu.memory_space<vmem>>, vector<8x256xf32>
    tpu.vector_store %arg9[%c0_160, %c17_161], %186 {strides = array<i32>} : memref<8x290xf32, #tpu.memory_space<vmem>>, vector<8x256xf32>,
    %c0_162 = arith.constant 0 : index
    %c0_163 = arith.constant 0 : index
    %189 = vector.load %arg9[%c0_162, %c0_163] : memref<8x290xf32, #tpu.memory_space<vmem>>, vector<8x256xf32>
    %cst_164 = arith.constant 0.000000e+00 : f32
    %190 = vector.shape_cast %24 : vector<1x256xi1> to vector<1x256xi1>
    %191 = vector.broadcast %190 : vector<1x256xi1> to vector<8x256xi1>
    %192 = vector.broadcast %cst_164 : f32 to vector<8x256xf32>
    %193 = arith.select %191, %189, %192 : vector<8x256xi1>, vector<8x256xf32>
    %c0_165 = arith.constant 0 : index
    %c0_166 = arith.constant 0 : index
    %194 = vector.load %arg10[%c0_165, %c0_166] : memref<72x256xf32, #tpu.memory_space<vmem>>, vector<8x256xf32>
    tpu.vector_store %arg10[%c0_165, %c0_166], %193 {strides = array<i32>} : memref<72x256xf32, #tpu.memory_space<vmem>>, vector<8x256xf32>,
    %c0_167 = arith.constant 0 : index
    %c1_168 = arith.constant 1 : index
    %195 = vector.load %arg9[%c0_167, %c1_168] : memref<8x290xf32, #tpu.memory_space<vmem>>, vector<8x256xf32>
    %c8_169 = arith.constant 8 : index
    %c0_170 = arith.constant 0 : index
    %196 = vector.load %arg10[%c8_169, %c0_170] : memref<72x256xf32, #tpu.memory_space<vmem>>, vector<8x256xf32>
    tpu.vector_store %arg10[%c8_169, %c0_170], %195 {strides = array<i32>} : memref<72x256xf32, #tpu.memory_space<vmem>>, vector<8x256xf32>,
    %c0_171 = arith.constant 0 : index
    %c2_172 = arith.constant 2 : index
    %197 = vector.load %arg9[%c0_171, %c2_172] : memref<8x290xf32, #tpu.memory_space<vmem>>, vector<8x256xf32>
    %cst_173 = arith.constant 0.000000e+00 : f32
    %198 = vector.shape_cast %26 : vector<1x256xi1> to vector<1x256xi1>
    %199 = vector.broadcast %198 : vector<1x256xi1> to vector<8x256xi1>
    %200 = vector.broadcast %cst_173 : f32 to vector<8x256xf32>
    %201 = arith.select %199, %197, %200 : vector<8x256xi1>, vector<8x256xf32>
    %c16_174 = arith.constant 16 : index
    %c0_175 = arith.constant 0 : index
    %202 = vector.load %arg10[%c16_174, %c0_175] : memref<72x256xf32, #tpu.memory_space<vmem>>, vector<8x256xf32>
    tpu.vector_store %arg10[%c16_174, %c0_175], %201 {strides = array<i32>} : memref<72x256xf32, #tpu.memory_space<vmem>>, vector<8x256xf32>,
    %c0_176 = arith.constant 0 : index
    %c16_177 = arith.constant 16 : index
    %203 = vector.load %arg9[%c0_176, %c16_177] : memref<8x290xf32, #tpu.memory_space<vmem>>, vector<8x256xf32>
    %cst_178 = arith.constant 0.000000e+00 : f32
    %204 = vector.shape_cast %24 : vector<1x256xi1> to vector<1x256xi1>
    %205 = vector.broadcast %204 : vector<1x256xi1> to vector<8x256xi1>
    %206 = vector.broadcast %cst_178 : f32 to vector<8x256xf32>
    %207 = arith.select %205, %203, %206 : vector<8x256xi1>, vector<8x256xf32>
    %c24_179 = arith.constant 24 : index
    %c0_180 = arith.constant 0 : index
    %208 = vector.load %arg10[%c24_179, %c0_180] : memref<72x256xf32, #tpu.memory_space<vmem>>, vector<8x256xf32>
    tpu.vector_store %arg10[%c24_179, %c0_180], %207 {strides = array<i32>} : memref<72x256xf32, #tpu.memory_space<vmem>>, vector<8x256xf32>,
    %c0_181 = arith.constant 0 : index
    %c17_182 = arith.constant 17 : index
    %209 = vector.load %arg9[%c0_181, %c17_182] : memref<8x290xf32, #tpu.memory_space<vmem>>, vector<8x256xf32>
    %c32_183 = arith.constant 32 : index
    %c0_184 = arith.constant 0 : index
    %210 = vector.load %arg10[%c32_183, %c0_184] : memref<72x256xf32, #tpu.memory_space<vmem>>, vector<8x256xf32>
    tpu.vector_store %arg10[%c32_183, %c0_184], %209 {strides = array<i32>} : memref<72x256xf32, #tpu.memory_space<vmem>>, vector<8x256xf32>,
    %c0_185 = arith.constant 0 : index
    %c18_186 = arith.constant 18 : index
    %211 = vector.load %arg9[%c0_185, %c18_186] : memref<8x290xf32, #tpu.memory_space<vmem>>, vector<8x256xf32>
    %cst_187 = arith.constant 0.000000e+00 : f32
    %212 = vector.shape_cast %26 : vector<1x256xi1> to vector<1x256xi1>
    %213 = vector.broadcast %212 : vector<1x256xi1> to vector<8x256xi1>
    %214 = vector.broadcast %cst_187 : f32 to vector<8x256xf32>
    %215 = arith.select %213, %211, %214 : vector<8x256xi1>, vector<8x256xf32>
    %c40_188 = arith.constant 40 : index
    %c0_189 = arith.constant 0 : index
    %216 = vector.load %arg10[%c40_188, %c0_189] : memref<72x256xf32, #tpu.memory_space<vmem>>, vector<8x256xf32>
    tpu.vector_store %arg10[%c40_188, %c0_189], %215 {strides = array<i32>} : memref<72x256xf32, #tpu.memory_space<vmem>>, vector<8x256xf32>,
    %c0_190 = arith.constant 0 : index
    %c32_191 = arith.constant 32 : index
    %217 = vector.load %arg9[%c0_190, %c32_191] : memref<8x290xf32, #tpu.memory_space<vmem>>, vector<8x256xf32>
    %cst_192 = arith.constant 0.000000e+00 : f32
    %218 = vector.shape_cast %24 : vector<1x256xi1> to vector<1x256xi1>
    %219 = vector.broadcast %218 : vector<1x256xi1> to vector<8x256xi1>
    %220 = vector.broadcast %cst_192 : f32 to vector<8x256xf32>
    %221 = arith.select %219, %217, %220 : vector<8x256xi1>, vector<8x256xf32>
    %c48_193 = arith.constant 48 : index
    %c0_194 = arith.constant 0 : index
    %222 = vector.load %arg10[%c48_193, %c0_194] : memref<72x256xf32, #tpu.memory_space<vmem>>, vector<8x256xf32>
    tpu.vector_store %arg10[%c48_193, %c0_194], %221 {strides = array<i32>} : memref<72x256xf32, #tpu.memory_space<vmem>>, vector<8x256xf32>,
    %c0_195 = arith.constant 0 : index
    %c33_196 = arith.constant 33 : index
    %223 = vector.load %arg9[%c0_195, %c33_196] : memref<8x290xf32, #tpu.memory_space<vmem>>, vector<8x256xf32>
    %c56_197 = arith.constant 56 : index
    %c0_198 = arith.constant 0 : index
    %224 = vector.load %arg10[%c56_197, %c0_198] : memref<72x256xf32, #tpu.memory_space<vmem>>, vector<8x256xf32>
    tpu.vector_store %arg10[%c56_197, %c0_198], %223 {strides = array<i32>} : memref<72x256xf32, #tpu.memory_space<vmem>>, vector<8x256xf32>,
    %c0_199 = arith.constant 0 : index
    %c34_200 = arith.constant 34 : index
    %225 = vector.load %arg9[%c0_199, %c34_200] : memref<8x290xf32, #tpu.memory_space<vmem>>, vector<8x256xf32>
    %cst_201 = arith.constant 0.000000e+00 : f32
    %226 = vector.shape_cast %26 : vector<1x256xi1> to vector<1x256xi1>
    %227 = vector.broadcast %226 : vector<1x256xi1> to vector<8x256xi1>
    %228 = vector.broadcast %cst_201 : f32 to vector<8x256xf32>
    %229 = arith.select %227, %225, %228 : vector<8x256xi1>, vector<8x256xf32>
    %c64_202 = arith.constant 64 : index
    %c0_203 = arith.constant 0 : index
    %230 = vector.load %arg10[%c64_202, %c0_203] : memref<72x256xf32, #tpu.memory_space<vmem>>, vector<8x256xf32>
    tpu.vector_store %arg10[%c64_202, %c0_203], %229 {strides = array<i32>} : memref<72x256xf32, #tpu.memory_space<vmem>>, vector<8x256xf32>,
    %c0_204 = arith.constant 0 : index
    %c0_205 = arith.constant 0 : index
    %231 = vector.load %arg10[%c0_204, %c0_205] : memref<72x256xf32, #tpu.memory_space<vmem>>, vector<72x256xf32>
    %cst_206 = arith.constant dense<0.000000e+00> : vector<8x256xf32>
    %232 = tpu.matmul %187, %231, %cst_206 {dimension_numbers = #tpu.dot_dimension_numbers<[1], [0], [0], [1], [0, 0, 1, 1], [], []>} : vector<8x72xf32>, vector<72x256xf32>, vector<8x256xf32> -> vector<8x256xf32>
    %c0_207 = arith.constant 0 : index
    %c0_208 = arith.constant 0 : index
    %233 = vector.load %arg5[%c0_207, %c0_208] : memref<8x1xf32, #tpu.memory_space<vmem>>, vector<8x1xf32>
    %234 = vector.broadcast %233 : vector<8x1xf32> to vector<8x256xf32>
    %235 = arith.addf %232, %234 : vector<8x256xf32>
    %cst_209 = arith.constant 0.000000e+00 : f32
    %236 = vector.broadcast %cst_209 : f32 to vector<8x256xf32>
    %237 = arith.maximumf %235, %236 : vector<8x256xf32>
    %c1_210 = arith.constant 1 : index
    %c0_211 = arith.constant 0 : index
    %c0_212 = arith.constant 0 : index
    %238 = vector.load %arg6[%c1_210, %c0_211, %c0_212] : memref<2x8x256xf32, #tpu.memory_space<vmem>>, vector<1x8x256xf32>
    %239 = vector.shape_cast %238 : vector<1x8x256xf32> to vector<8x256xf32>
    %240 = vector.shape_cast %237 : vector<8x256xf32> to vector<1x8x256xf32>
    tpu.vector_store %arg6[%c1_210, %c0_211, %c0_212], %240 {strides = array<i32>} : memref<2x8x256xf32, #tpu.memory_space<vmem>>, vector<1x8x256xf32>,
    return
  }
  func.func @transform_0(%arg0: i32) -> (i32, i32, i32) {
    %c0_i32 = arith.constant 0 : i32
    %c0_i32_0 = arith.constant 0 : i32
    %c0_i32_1 = arith.constant 0 : i32
    return %arg0, %c0_i32, %c0_i32_0 : i32, i32, i32
  }
  func.func @transform_1(%arg0: i32) -> (i32, i32) {
    %c0_i32 = arith.constant 0 : i32
    %c0_i32_0 = arith.constant 0 : i32
    %c0_i32_1 = arith.constant 0 : i32
    return %c0_i32, %c0_i32_0 : i32, i32
  }
  func.func @transform_2(%arg0: i32) -> (i32, i32) {
    %c0_i32 = arith.constant 0 : i32
    %c0_i32_0 = arith.constant 0 : i32
    %c0_i32_1 = arith.constant 0 : i32
    return %c0_i32, %c0_i32_0 : i32, i32
  }
  func.func @transform_3(%arg0: i32) -> (i32, i32) {
    %c0_i32 = arith.constant 0 : i32
    %c0_i32_0 = arith.constant 0 : i32
    %c0_i32_1 = arith.constant 0 : i32
    return %c0_i32, %c0_i32_0 : i32, i32
  }
  func.func @transform_4(%arg0: i32) -> (i32, i32) {
    %c0_i32 = arith.constant 0 : i32
    %c0_i32_0 = arith.constant 0 : i32
    %c0_i32_1 = arith.constant 0 : i32
    return %c0_i32, %c0_i32_0 : i32, i32
  }
  func.func @transform_5(%arg0: i32) -> (i32, i32, i32) {
    %c0_i32 = arith.constant 0 : i32
    %c0_i32_0 = arith.constant 0 : i32
    %c0_i32_1 = arith.constant 0 : i32
    return %arg0, %c0_i32, %c0_i32_0 : i32, i32, i32
  }
}

</mosaic_0001>

<llo_original>
// kernel: two_conv_forward.1
$region0: #{two_conv_forward.1}
  #allocation0 [shape = 'u32[]', space=smem, size = 0x4, offset = 0x4, fixed_abs, tag = 'smem constant byte address 0x4 - core index']
  #allocation1 [shape = 'u32[144,128]{1,0:T(1,128)}', space=vmem, size = 0x12000, scoped, tag = 'internal scratch']
  #allocation2 [shape = 'f32[4,290]{1,0:T(4,128)}', space=vmem, size = 0x1800, scoped, tag = 'scratch operand']
  #allocation3 [shape = 'f32[36,256]{1,0:T(8,128)}', space=vmem, size = 0xa000, scoped, tag = 'scratch operand']
  #allocation4 [shape = 'f32[8,290]{1,0:T(8,128)}', space=vmem, size = 0x3000, scoped, tag = 'scratch operand']
  #allocation5 [shape = 'f32[72,256]{1,0:T(8,128)}', space=vmem, size = 0x12000, scoped, tag = 'scratch operand']
  %s0 = inlined_call_operand.vmem [shape: f32[2,4,256], index: 0, kind: input, shape index: {}]
  %s1 = inlined_call_operand.vmem [shape: f32[8,36], index: 1, kind: input, shape index: {}]
  %s2 = inlined_call_operand.vmem [shape: f32[8,1], index: 2, kind: input, shape index: {}]
  %s3 = inlined_call_operand.vmem [shape: f32[8,72], index: 3, kind: input, shape index: {}]
  %s4 = inlined_call_operand.vmem [shape: f32[8,1], index: 4, kind: input, shape index: {}]
  %s5 = inlined_call_operand.vmem [shape: f32[2,8,256], index: 5, kind: output, shape index: {}]
  %s6 = sld [smem:[#allocation0]]
  $region30: #{two_conv_forward.1} parent=0
    _
  %s8 = ssub.s32 1, %s6
  %s9 = scalar_select 0, %s8, %s6
  // Predicated region
  $region2: #{two_conv_forward.1} parent=0 // pred_check
    _
  $region3: #{two_conv_forward.1} parent=0 // pred_check_branch
    %11 = sbr.rel (0) target = $region5
  $region4: #{two_conv_forward.1} parent=0 // pred_region
    _
  $region5: #{two_conv_forward.1} parent=0 // pred_fallthru
    _
  // Predicated region
  $region6: #{two_conv_forward.1} parent=0 // pred_check
    _
  $region7: #{two_conv_forward.1} parent=0 // pred_check_branch
    %13 = sbr.rel (0) target = $region9
  $region8: #{two_conv_forward.1} parent=0 // pred_region
    _
  $region9: #{two_conv_forward.1} parent=0 // pred_fallthru
    _
  // Predicated region
  $region10: #{two_conv_forward.1} parent=0 // pred_check
    _
  $region11: #{two_conv_forward.1} parent=0 // pred_check_branch
    %15 = sbr.rel (0) target = $region13
  $region12: #{two_conv_forward.1} parent=0 // pred_region
    _
  $region13: #{two_conv_forward.1} parent=0 // pred_fallthru
    _
  // Predicated region
  $region14: #{two_conv_forward.1} parent=0 // pred_check
    _
  $region15: #{two_conv_forward.1} parent=0 // pred_check_branch
    %17 = sbr.rel (0) target = $region17
  $region16: #{two_conv_forward.1} parent=0 // pred_region
    _
  $region17: #{two_conv_forward.1} parent=0 // pred_fallthru
    _
  // Predicated region
  $region18: #{two_conv_forward.1} parent=0 // pred_check
    _
  $region19: #{two_conv_forward.1} parent=0 // pred_check_branch
    %19 = sbr.rel (0) target = $region21
  $region20: #{two_conv_forward.1} parent=0 // pred_region
    _
  $region21: #{two_conv_forward.1} parent=0 // pred_fallthru
    _
  %vm20 = vcmask 134144
  %21 = vst.msk [vmem:[#allocation2] sm:$0xf] %vm20, 0.0
  %vm22 = vcmask 273544
  %23 = vst.msk [vmem:[#allocation2 + $0x8] sm:$0xf] %vm22, 0.0
  %vm24 = vcmask 138240
  %25 = vst.msk [vmem:[#allocation4] sm:$0xff] %vm24, 0.0
  %vm26 = vcmask 277640
  %27 = vst.msk [vmem:[#allocation4 + $0x10] sm:$0xff] %vm26, 0.0
  %v28 = vlaneseq
  %v29 = vand.u32 %v28, 127
  %v30 = vadd.s32 %v29, 128
  %vm31 = vcmp.lt.s32.totalorder %v29, 0
  %v32 = vsub.s32 0, %v29
  %v33 = vsel %vm31, %v32, %v29
  %v34 = vshrl.u32 %v33, 4
  %v35 = vand.u32 %v33, 15
  %v36 = vsub.s32 0, %v35
  %v37 = vsel %vm31, %v36, %v35
  %vm38 = vcmp.lt.s32.totalorder %v30, 0
  %v39 = vsub.s32 0, %v30
  %v40 = vsel %vm38, %v39, %v30
  %v41 = vshrl.u32 %v40, 4
  %v42 = vand.u32 %v40, 15
  %v43 = vsub.s32 0, %v42
  %v44 = vsel %vm38, %v43, %v42
  %vm45 = vcmp.ne.s32.totalorder %v37, 0
  %vm46 = vcmp.ne.s32.totalorder %v44, 0
  %vm47 = vcmp.lt.s32.totalorder %v37, 0
  %vm48 = vcmp.lt.s32.totalorder %v44, 0
  %vm49 = vmand %vm47, %vm45
  %vm50 = vmand %vm48, %vm46
  %v51 = vadd.s32 %v37, 16
  %v52 = vadd.s32 %v44, 16
  %v53 = vsel %vm49, %v51, %v37
  %v54 = vsel %vm50, %v52, %v44
  %vm55 = vcmp.ge.s32.totalorder %v53, 1
  %vm56 = vcmp.ge.s32.totalorder %v54, 1
  %vm57 = vcmp.lt.s32.totalorder %v53, 15
  %vm58 = vcmp.lt.s32.totalorder %v54, 15
  %v59 = vld [vmem:[%s1] sm:$0xff]
  %v60 = vld [vmem:[%s0] sm:$0xff]
  %62 = vrot.lane.b32.xlu0 %v60, 17
  %v63 = vpop.permute.xlu0 %62
  %v64 = vrot.slane %v63, 4
  %v65 = vsel %vm24, %v64, %v63
  %vm68 = vcmask 1043592
  %vm69 = vcmask 1047556
  %vm70 = vmor %vm69, %vm68
  %71 = vst.msk [vmem:[#allocation2] sm:$0xff] %vm70, %v65
  %72 = vst.msk [vmem:[#allocation2 + $0x8] sm:$0xf] %vm20, %v64
  %v73 = vld [vmem:[#allocation2] sm:$0xff]
  %v74 = vsel %vm55, 1, 0
  %v75 = vsel %vm56, 1, 0
  %vm76 = vcmp.eq.s32.totalorder %v74, 1
  %vm77 = vcmp.eq.s32.totalorder %v75, 1
  %v79 = vcombine.high %v73, %v73
  %v81 = vsel %vm76, %v73, 0.0
  %v82 = vsel %vm77, %v79, 0.0
  %83 = vst [vmem:[#allocation3] sm:$0xf] %v81
  %84 = vst [vmem:[#allocation3 + $0x8] sm:$0xf] %v82
  %v85 = vld [vmem:[#allocation2] sm:$0xff]
  %v86 = vld [vmem:[#allocation2 + $0x8] sm:$0xf]
  %v89 = vcombine.low %v85, %v85
  %v90 = vcombine.low %v86, %v86
  %91 = vrot.lane.b32.xlu0 %v89, 127
  %v92 = vpop.permute.xlu0 %91
  %93 = vrot.lane.b32.xlu0 %v85, 127
  %v94 = vpop.permute.xlu0 %93
  %95 = vrot.lane.b32.xlu0 %v90, 127
  %v96 = vpop.permute.xlu0 %95
  %vm97 = vcmask 1039360
  %v98 = vsel %vm97, %v92, %v94
  %v99 = vsel %vm97, %v94, %v96
  %102 = vst [vmem:[#allocation3] sm:$0xf0] %v98
  %103 = vst [vmem:[#allocation3 + $0x8] sm:$0xf0] %v99
  %v104 = vld [vmem:[#allocation2] sm:$0xff]
  %v105 = vld [vmem:[#allocation2 + $0x8] sm:$0xf]
  %v106 = vsel %vm57, 1, 0
  %v107 = vsel %vm58, 1, 0
  %vm108 = vcmp.eq.s32.totalorder %v106, 1
  %vm109 = vcmp.eq.s32.totalorder %v107, 1
  %v112 = vcombine.high %v104, %v104
  %113 = vrot.lane.b32.xlu0 %v104, 126
  %v114 = vpop.permute.xlu0 %113
  %115 = vrot.lane.b32.xlu0 %v112, 126
  %v116 = vpop.permute.xlu0 %115
  %117 = vrot.lane.b32.xlu0 %v105, 126
  %v118 = vpop.permute.xlu0 %117
  %vm119 = vcmask 1031168
  %v120 = vsel %vm119, %v114, %v116
  %v121 = vsel %vm119, %v116, %v118
  %v124 = vsel %vm108, %v120, 0.0
  %v125 = vsel %vm109, %v121, 0.0
  %126 = vst [vmem:[#allocation3 + $0x10] sm:$0xf] %v124
  %127 = vst [vmem:[#allocation3 + $0x18] sm:$0xf] %v125
  %v128 = vld [vmem:[#allocation2] sm:$0xff]
  %v129 = vld [vmem:[#allocation2 + $0x8] sm:$0xf]
  %v132 = vcombine.high %v128, %v128
  %133 = vrot.lane.b32.xlu0 %v128, 112
  %v134 = vpop.permute.xlu0 %133
  %135 = vrot.lane.b32.xlu0 %v132, 112
  %v136 = vpop.permute.xlu0 %135
  %137 = vrot.lane.b32.xlu0 %v129, 112
  %v138 = vpop.permute.xlu0 %137
  %vm139 = vcmask 916480
  %v140 = vsel %vm139, %v134, %v136
  %v141 = vsel %vm139, %v136, %v138
  %v144 = vsel %vm76, %v140, 0.0
  %v145 = vsel %vm77, %v141, 0.0
  %v148 = vrot.slane %v144, 4
  %v149 = vrot.slane %v145, 4
  %152 = vst [vmem:[#allocation3 + $0x10] sm:$0xf0] %v148
  %153 = vst [vmem:[#allocation3 + $0x18] sm:$0xf0] %v149
  %v154 = vld [vmem:[#allocation2] sm:$0xff]
  %v155 = vld [vmem:[#allocation2 + $0x8] sm:$0xf]
  %v158 = vcombine.high %v154, %v154
  %159 = vrot.lane.b32.xlu0 %v154, 111
  %v160 = vpop.permute.xlu0 %159
  %161 = vrot.lane.b32.xlu0 %v158, 111
  %v162 = vpop.permute.xlu0 %161
  %163 = vrot.lane.b32.xlu0 %v155, 111
  %v164 = vpop.permute.xlu0 %163
  %vm165 = vcmask 908288
  %v166 = vsel %vm165, %v160, %v162
  %v167 = vsel %vm165, %v162, %v164
  %170 = vst [vmem:[#allocation3 + $0x20] sm:$0xf] %v166
  %171 = vst [vmem:[#allocation3 + $0x28] sm:$0xf] %v167
  %v172 = vld [vmem:[#allocation2] sm:$0xff]
  %v173 = vld [vmem:[#allocation2 + $0x8] sm:$0xf]
  %v176 = vcombine.high %v172, %v172
  %177 = vrot.lane.b32.xlu0 %v172, 110
  %v178 = vpop.permute.xlu0 %177
  %179 = vrot.lane.b32.xlu0 %v176, 110
  %v180 = vpop.permute.xlu0 %179
  %181 = vrot.lane.b32.xlu0 %v173, 110
  %v182 = vpop.permute.xlu0 %181
  %vm183 = vcmask 900096
  %v184 = vsel %vm183, %v178, %v180
  %v185 = vsel %vm183, %v180, %v182
  %v188 = vsel %vm108, %v184, 0.0
  %v189 = vsel %vm109, %v185, 0.0
  %v192 = vrot.slane %v188, 4
  %v193 = vrot.slane %v189, 4
  %196 = vst [vmem:[#allocation3 + $0x20] sm:$0xf0] %v192
  %197 = vst [vmem:[#allocation3 + $0x28] sm:$0xf0] %v193
  %v198 = vld [vmem:[#allocation2] sm:$0xff]
  %v199 = vld [vmem:[#allocation2 + $0x8] sm:$0xf]
  %v202 = vcombine.high %v198, %v198
  %203 = vrot.lane.b32.xlu0 %v198, 96
  %v204 = vpop.permute.xlu0 %203
  %205 = vrot.lane.b32.xlu0 %v202, 96
  %v206 = vpop.permute.xlu0 %205
  %207 = vrot.lane.b32.xlu0 %v199, 96
  %v208 = vpop.permute.xlu0 %207
  %vm209 = vcmask 785408
  %v210 = vsel %vm209, %v204, %v206
  %v211 = vsel %vm209, %v206, %v208
  %v214 = vsel %vm76, %v210, 0.0
  %v215 = vsel %vm77, %v211, 0.0
  %216 = vst [vmem:[#allocation3 + $0x30] sm:$0xf] %v214
  %217 = vst [vmem:[#allocation3 + $0x38] sm:$0xf] %v215
  %v218 = vld [vmem:[#allocation2] sm:$0xff]
  %v219 = vld [vmem:[#allocation2 + $0x8] sm:$0xf]
  %v222 = vcombine.low %v218, %v218
  %v223 = vcombine.low %v219, %v219
  %224 = vrot.lane.b32.xlu0 %v222, 95
  %v225 = vpop.permute.xlu0 %224
  %226 = vrot.lane.b32.xlu0 %v218, 95
  %v227 = vpop.permute.xlu0 %226
  %228 = vrot.lane.b32.xlu0 %v223, 95
  %v229 = vpop.permute.xlu0 %228
  %vm230 = vcmask 777216
  %v231 = vsel %vm230, %v225, %v227
  %v232 = vsel %vm230, %v227, %v229
  %235 = vst [vmem:[#allocation3 + $0x30] sm:$0xf0] %v231
  %236 = vst [vmem:[#allocation3 + $0x38] sm:$0xf0] %v232
  %v237 = vld [vmem:[#allocation2] sm:$0xff]
  %v238 = vld [vmem:[#allocation2 + $0x8] sm:$0xf]
  %v241 = vcombine.high %v237, %v237
  %242 = vrot.lane.b32.xlu0 %v237, 94
  %v243 = vpop.permute.xlu0 %242
  %244 = vrot.lane.b32.xlu0 %v241, 94
  %v245 = vpop.permute.xlu0 %244
  %246 = vrot.lane.b32.xlu0 %v238, 94
  %v247 = vpop.permute.xlu0 %246
  %vm248 = vcmask 769024
  %v249 = vsel %vm248, %v243, %v245
  %v250 = vsel %vm248, %v245, %v247
  %v253 = vsel %vm108, %v249, 0.0
  %v254 = vsel %vm109, %v250, 0.0
  %255 = vst [vmem:[#allocation3 + $0x40] sm:$0xf] %v253
  %256 = vst [vmem:[#allocation3 + $0x48] sm:$0xf] %v254
  %v257 = vld [vmem:[#allocation3] sm:$0xff]
  %v258 = vld [vmem:[#allocation3 + $0x8] sm:$0xff]
  %v259 = vld [vmem:[#allocation3 + $0x10] sm:$0xff]
  %v260 = vld [vmem:[#allocation3 + $0x18] sm:$0xff]
  %v261 = vld [vmem:[#allocation3 + $0x20] sm:$0xff]
  %v262 = vld [vmem:[#allocation3 + $0x28] sm:$0xff]
  %v263 = vld [vmem:[#allocation3 + $0x30] sm:$0xff]
  %v264 = vld [vmem:[#allocation3 + $0x38] sm:$0xff]
  %v265 = vld [vmem:[#allocation3 + $0x40] sm:$0xf]
  %v266 = vld [vmem:[#allocation3 + $0x48] sm:$0xf]
  %v267 = vld [vmem:[%s2] sm:$0xff]
  %269 = vset.pattern.permute.xlu0 0
  %270 = vperm.xlu0 %269, %v267
  %v271 = vpop.permute.xlu0 %270
  %vm273 = vcmask 293888
  %v275 = vsel %vm273, %v59, 0
  %vm277 = vcmask 1043456
  %v279 = vsel %vm277, %v265, 0
  %v282 = vsel %vm277, %v266, 0
  %284 = vmatprep.subr.mxu0 %v258
  %285 = vmatpush1.msra.mxu0 %v257
  %286 = vmatprep.subr.mxu0 %v260
  %287 = vmatpush1.msra.mxu0 %v259
  %288 = vmatprep.subr.mxu0 %v262
  %289 = vmatpush1.msra.mxu0 %v261
  %290 = vmatprep.subr.mxu0 %v264
  %291 = vmatpush1.msra.mxu0 %v263
  %292 = vmatprep.subr.mxu0 %v282
  %293 = vmatpush1.msra.mxu0 %v279
  %294 = vmatprep.subr.mxu0 0.0
  %295 = vmatpush1.msra.mxu0 0.0
  %296 = vmatprep.subr.mxu0 0.0
  %297 = vmatpush1.msra.mxu0 0.0
  %298 = vmatprep.subr.mxu0 0.0
  %299 = vmatpush1.msra.mxu0 0.0
  %300 = vmatprep.subr.mxu0 0.0
  %301 = vmatpush1.msra.mxu0 0.0
  %302 = vmatprep.subr.mxu0 0.0
  %303 = vmatpush1.msra.mxu0 0.0
  %304 = vmatprep.subr.mxu0 0.0
  %305 = vmatpush1.msra.mxu0 0.0
  %306 = vmatprep.subr.mxu0 0.0
  %307 = vmatpush1.msra.mxu0 0.0
  %308 = vmatprep.subr.mxu0 0.0
  %309 = vmatpush1.msra.mxu0 0.0
  %310 = vmatprep.subr.mxu0 0.0
  %311 = vmatpush1.msra.mxu0 0.0
  %312 = vmatprep.subr.mxu0 0.0
  %313 = vmatpush1.msra.mxu0 0.0
  %314 = vmatprep.subr.mxu0 0.0
  %315 = vmatpush1.msra.mxu0 0.0
  %316 = vmatprep.subr.mxu0 0.0
  %317 = vmatpush1.msra.mxu0 0.0
  %318 = vmatprep.subr.mxu0 0.0
  %319 = vmatpush1.msra.mxu0 0.0
  %320 = vmatprep.subr.mxu0 0.0
  %321 = vmatpush1.msra.mxu0 0.0
  %322 = vmatprep.subr.mxu0 0.0
  %323 = vmatpush1.msra.mxu0 0.0
  %324 = vmatprep.subr.mxu0 0.0
  %325 = vmatpush1.msra.mxu0 0.0
  %326 = vmatprep.subr.mxu0 0.0
  %327 = vmatpush1.msra.mxu0 0.0
  %328 = vmatprep.subr.mxu0 0.0
  %329 = vmatpush1.msra.mxu0 0.0
  %330 = vmatprep.subr.mxu0 0.0
  %331 = vmatpush1.msra.mxu0 0.0
  %332 = vmatprep.subr.mxu0 0.0
  %333 = vmatpush1.msra.mxu0 0.0
  %334 = vmatprep.subr.mxu0 0.0
  %335 = vmatpush1.msra.mxu0 0.0
  %336 = vmatprep.subr.mxu0 0.0
  %337 = vmatpush1.msra.mxu0 0.0
  %338 = vmatprep.subr.mxu0 0.0
  %339 = vmatpush1.msra.mxu0 0.0
  %340 = vmatprep.subr.mxu0 0.0
  %341 = vmatpush1.msra.mxu0 0.0
  %342 = vmatprep.subr.mxu0 0.0
  %343 = vmatpush1.msra.mxu0 0.0
  %344 = vmatprep.subr.mxu0 0.0
  %345 = vmatpush1.msra.mxu0 0.0
  %346 = vmatprep.subr.mxu0 0.0
  %347 = vmatpush1.msra.mxu0 0.0
  %348 = vmatprep.mubr.f32.mxu0 0.0
  %349 = vmatmul.mubr.f32.gmra.mrb[0].mxu0 %v275
  %v350 = vpop.f32.mrb[0].mxu0
  %v351 = vadd.f32 %v271, %v350
  %v352 = vpop.f32.mrb[0].mxu0
  %v353 = vadd.f32 %v271, %v352
  %354 = vdwg.mxu0
  %v355 = vmax.f32 %v351, 0.0
  %v356 = vmax.f32 %v353, 0.0
  %v357 = vld [vmem:[%s3] sm:$0xff]
  %360 = vrot.lane.b32.xlu0 %v355, 17
  %v361 = vpop.permute.xlu0 %360
  %362 = vrot.lane.b32.xlu0 %v356, 17
  %v363 = vpop.permute.xlu0 %362
  %v364 = vsel %vm24, %v361, %v363
  %vm368 = vcmask 1047688
  %369 = vst.msk [vmem:[#allocation4] sm:$0xff] %vm368, %v361
  %370 = vst [vmem:[#allocation4 + $0x8] sm:$0xff] %v364
  %371 = vst.msk [vmem:[#allocation4 + $0x10] sm:$0xff] %vm24, %v363
  %v372 = vld [vmem:[#allocation4] sm:$0xff]
  %v373 = vld [vmem:[#allocation4 + $0x8] sm:$0xff]
  %v374 = vsel %vm76, %v372, 0.0
  %v375 = vsel %vm77, %v373, 0.0
  %376 = vst [vmem:[#allocation5] sm:$0xff] %v374
  %377 = vst [vmem:[#allocation5 + $0x8] sm:$0xff] %v375
  %v378 = vld [vmem:[#allocation4] sm:$0xff]
  %v379 = vld [vmem:[#allocation4 + $0x8] sm:$0xff]
  %v380 = vld [vmem:[#allocation4 + $0x10] sm:$0xff]
  %384 = vrot.lane.b32.xlu0 %v378, 127
  %v385 = vpop.permute.xlu0 %384
  %386 = vrot.lane.b32.xlu0 %v379, 127
  %v387 = vpop.permute.xlu0 %386
  %388 = vrot.lane.b32.xlu0 %v380, 127
  %v389 = vpop.permute.xlu0 %388
  %v390 = vsel %vm97, %v385, %v387
  %v391 = vsel %vm97, %v387, %v389
  %394 = vst [vmem:[#allocation5 + $0x10] sm:$0xff] %v390
  %395 = vst [vmem:[#allocation5 + $0x18] sm:$0xff] %v391
  %v396 = vld [vmem:[#allocation4] sm:$0xff]
  %v397 = vld [vmem:[#allocation4 + $0x8] sm:$0xff]
  %v398 = vld [vmem:[#allocation4 + $0x10] sm:$0xff]
  %402 = vrot.lane.b32.xlu0 %v396, 126
  %v403 = vpop.permute.xlu0 %402
  %404 = vrot.lane.b32.xlu0 %v397, 126
  %v405 = vpop.permute.xlu0 %404
  %406 = vrot.lane.b32.xlu0 %v398, 126
  %v407 = vpop.permute.xlu0 %406
  %v408 = vsel %vm119, %v403, %v405
  %v409 = vsel %vm119, %v405, %v407
  %v412 = vsel %vm108, %v408, 0.0
  %v413 = vsel %vm109, %v409, 0.0
  %414 = vst [vmem:[#allocation5 + $0x20] sm:$0xff] %v412
  %415 = vst [vmem:[#allocation5 + $0x28] sm:$0xff] %v413
  %v416 = vld [vmem:[#allocation4] sm:$0xff]
  %v417 = vld [vmem:[#allocation4 + $0x8] sm:$0xff]
  %v418 = vld [vmem:[#allocation4 + $0x10] sm:$0xff]
  %422 = vrot.lane.b32.xlu0 %v416, 112
  %v423 = vpop.permute.xlu0 %422
  %424 = vrot.lane.b32.xlu0 %v417, 112
  %v425 = vpop.permute.xlu0 %424
  %426 = vrot.lane.b32.xlu0 %v418, 112
  %v427 = vpop.permute.xlu0 %426
  %v428 = vsel %vm139, %v423, %v425
  %v429 = vsel %vm139, %v425, %v427
  %v432 = vsel %vm76, %v428, 0.0
  %v433 = vsel %vm77, %v429, 0.0
  %434 = vst [vmem:[#allocation5 + $0x30] sm:$0xff] %v432
  %435 = vst [vmem:[#allocation5 + $0x38] sm:$0xff] %v433
  %v436 = vld [vmem:[#allocation4] sm:$0xff]
  %v437 = vld [vmem:[#allocation4 + $0x8] sm:$0xff]
  %v438 = vld [vmem:[#allocation4 + $0x10] sm:$0xff]
  %442 = vrot.lane.b32.xlu0 %v436, 111
  %v443 = vpop.permute.xlu0 %442
  %444 = vrot.lane.b32.xlu0 %v437, 111
  %v445 = vpop.permute.xlu0 %444
  %446 = vrot.lane.b32.xlu0 %v438, 111
  %v447 = vpop.permute.xlu0 %446
  %v448 = vsel %vm165, %v443, %v445
  %v449 = vsel %vm165, %v445, %v447
  %452 = vst [vmem:[#allocation5 + $0x40] sm:$0xff] %v448
  %453 = vst [vmem:[#allocation5 + $0x48] sm:$0xff] %v449
  %v454 = vld [vmem:[#allocation4] sm:$0xff]
  %v455 = vld [vmem:[#allocation4 + $0x8] sm:$0xff]
  %v456 = vld [vmem:[#allocation4 + $0x10] sm:$0xff]
  %460 = vrot.lane.b32.xlu0 %v454, 110
  %v461 = vpop.permute.xlu0 %460
  %462 = vrot.lane.b32.xlu0 %v455, 110
  %v463 = vpop.permute.xlu0 %462
  %464 = vrot.lane.b32.xlu0 %v456, 110
  %v465 = vpop.permute.xlu0 %464
  %v466 = vsel %vm183, %v461, %v463
  %v467 = vsel %vm183, %v463, %v465
  %v470 = vsel %vm108, %v466, 0.0
  %v471 = vsel %vm109, %v467, 0.0
  %472 = vst [vmem:[#allocation5 + $0x50] sm:$0xff] %v470
  %473 = vst [vmem:[#allocation5 + $0x58] sm:$0xff] %v471
  %v474 = vld [vmem:[#allocation4] sm:$0xff]
  %v475 = vld [vmem:[#allocation4 + $0x8] sm:$0xff]
  %v476 = vld [vmem:[#allocation4 + $0x10] sm:$0xff]
  %480 = vrot.lane.b32.xlu0 %v474, 96
  %v481 = vpop.permute.xlu0 %480
  %482 = vrot.lane.b32.xlu0 %v475, 96
  %v483 = vpop.permute.xlu0 %482
  %484 = vrot.lane.b32.xlu0 %v476, 96
  %v485 = vpop.permute.xlu0 %484
  %v486 = vsel %vm209, %v481, %v483
  %v487 = vsel %vm209, %v483, %v485
  %v490 = vsel %vm76, %v486, 0.0
  %v491 = vsel %vm77, %v487, 0.0
  %492 = vst [vmem:[#allocation5 + $0x60] sm:$0xff] %v490
  %493 = vst [vmem:[#allocation5 + $0x68] sm:$0xff] %v491
  %v494 = vld [vmem:[#allocation4] sm:$0xff]
  %v495 = vld [vmem:[#allocation4 + $0x8] sm:$0xff]
  %v496 = vld [vmem:[#allocation4 + $0x10] sm:$0xff]
  %500 = vrot.lane.b32.xlu0 %v494, 95
  %v501 = vpop.permute.xlu0 %500
  %502 = vrot.lane.b32.xlu0 %v495, 95
  %v503 = vpop.permute.xlu0 %502
  %504 = vrot.lane.b32.xlu0 %v496, 95
  %v505 = vpop.permute.xlu0 %504
  %v506 = vsel %vm230, %v501, %v503
  %v507 = vsel %vm230, %v503, %v505
  %510 = vst [vmem:[#allocation5 + $0x70] sm:$0xff] %v506
  %511 = vst [vmem:[#allocation5 + $0x78] sm:$0xff] %v507
  %v512 = vld [vmem:[#allocation4] sm:$0xff]
  %v513 = vld [vmem:[#allocation4 + $0x8] sm:$0xff]
  %v514 = vld [vmem:[#allocation4 + $0x10] sm:$0xff]
  %518 = vrot.lane.b32.xlu0 %v512, 94
  %v519 = vpop.permute.xlu0 %518
  %520 = vrot.lane.b32.xlu0 %v513, 94
  %v521 = vpop.permute.xlu0 %520
  %522 = vrot.lane.b32.xlu0 %v514, 94
  %v523 = vpop.permute.xlu0 %522
  %v524 = vsel %vm248, %v519, %v521
  %v525 = vsel %vm248, %v521, %v523
  %v528 = vsel %vm108, %v524, 0.0
  %v529 = vsel %vm109, %v525, 0.0
  %530 = vst [vmem:[#allocation5 + $0x80] sm:$0xff] %v528
  %531 = vst [vmem:[#allocation5 + $0x88] sm:$0xff] %v529
  %v532 = vld [vmem:[#allocation5] sm:$0xff]
  %v533 = vld [vmem:[#allocation5 + $0x8] sm:$0xff]
  %v534 = vld [vmem:[#allocation5 + $0x10] sm:$0xff]
  %v535 = vld [vmem:[#allocation5 + $0x18] sm:$0xff]
  %v536 = vld [vmem:[#allocation5 + $0x20] sm:$0xff]
  %v537 = vld [vmem:[#allocation5 + $0x28] sm:$0xff]
  %v538 = vld [vmem:[#allocation5 + $0x30] sm:$0xff]
  %v539 = vld [vmem:[#allocation5 + $0x38] sm:$0xff]
  %v540 = vld [vmem:[#allocation5 + $0x40] sm:$0xff]
  %v541 = vld [vmem:[#allocation5 + $0x48] sm:$0xff]
  %v542 = vld [vmem:[#allocation5 + $0x50] sm:$0xff]
  %v543 = vld [vmem:[#allocation5 + $0x58] sm:$0xff]
  %v544 = vld [vmem:[#allocation5 + $0x60] sm:$0xff]
  %v545 = vld [vmem:[#allocation5 + $0x68] sm:$0xff]
  %v546 = vld [vmem:[#allocation5 + $0x70] sm:$0xff]
  %v547 = vld [vmem:[#allocation5 + $0x78] sm:$0xff]
  %v548 = vld [vmem:[#allocation5 + $0x80] sm:$0xff]
  %v549 = vld [vmem:[#allocation5 + $0x88] sm:$0xff]
  %v550 = vld [vmem:[%s4] sm:$0xff]
  %552 = vset.pattern.permute.xlu0 0
  %553 = vperm.xlu0 %552, %v550
  %v554 = vpop.permute.xlu0 %553
  %vm556 = vcmask 588800
  %v558 = vsel %vm556, %v357, 0
  %560 = vmatprep.subr.mxu0 %v533
  %561 = vmatpush1.msra.mxu0 %v532
  %562 = vmatprep.subr.mxu0 %v535
  %563 = vmatpush1.msra.mxu0 %v534
  %564 = vmatprep.subr.mxu0 %v537
  %565 = vmatpush1.msra.mxu0 %v536
  %566 = vmatprep.subr.mxu0 %v539
  %567 = vmatpush1.msra.mxu0 %v538
  %568 = vmatprep.subr.mxu0 %v541
  %569 = vmatpush1.msra.mxu0 %v540
  %570 = vmatprep.subr.mxu0 %v543
  %571 = vmatpush1.msra.mxu0 %v542
  %572 = vmatprep.subr.mxu0 %v545
  %573 = vmatpush1.msra.mxu0 %v544
  %574 = vmatprep.subr.mxu0 %v547
  %575 = vmatpush1.msra.mxu0 %v546
  %576 = vmatprep.subr.mxu0 %v549
  %577 = vmatpush1.msra.mxu0 %v548
  %578 = vmatprep.subr.mxu0 0.0
  %579 = vmatpush1.msra.mxu0 0.0
  %580 = vmatprep.subr.mxu0 0.0
  %581 = vmatpush1.msra.mxu0 0.0
  %582 = vmatprep.subr.mxu0 0.0
  %583 = vmatpush1.msra.mxu0 0.0
  %584 = vmatprep.subr.mxu0 0.0
  %585 = vmatpush1.msra.mxu0 0.0
  %586 = vmatprep.subr.mxu0 0.0
  %587 = vmatpush1.msra.mxu0 0.0
  %588 = vmatprep.subr.mxu0 0.0
  %589 = vmatpush1.msra.mxu0 0.0
  %590 = vmatprep.subr.mxu0 0.0
  %591 = vmatpush1.msra.mxu0 0.0
  %592 = vmatprep.subr.mxu0 0.0
  %593 = vmatpush1.msra.mxu0 0.0
  %594 = vmatprep.subr.mxu0 0.0
  %595 = vmatpush1.msra.mxu0 0.0
  %596 = vmatprep.subr.mxu0 0.0
  %597 = vmatpush1.msra.mxu0 0.0
  %598 = vmatprep.subr.mxu0 0.0
  %599 = vmatpush1.msra.mxu0 0.0
  %600 = vmatprep.subr.mxu0 0.0
  %601 = vmatpush1.msra.mxu0 0.0
  %602 = vmatprep.subr.mxu0 0.0
  %603 = vmatpush1.msra.mxu0 0.0
  %604 = vmatprep.subr.mxu0 0.0
  %605 = vmatpush1.msra.mxu0 0.0
  %606 = vmatprep.subr.mxu0 0.0
  %607 = vmatpush1.msra.mxu0 0.0
  %608 = vmatprep.subr.mxu0 0.0
  %609 = vmatpush1.msra.mxu0 0.0
  %610 = vmatprep.subr.mxu0 0.0
  %611 = vmatpush1.msra.mxu0 0.0
  %612 = vmatprep.subr.mxu0 0.0
  %613 = vmatpush1.msra.mxu0 0.0
  %614 = vmatprep.subr.mxu0 0.0
  %615 = vmatpush1.msra.mxu0 0.0
  %616 = vmatprep.subr.mxu0 0.0
  %617 = vmatpush1.msra.mxu0 0.0
  %618 = vmatprep.subr.mxu0 0.0
  %619 = vmatpush1.msra.mxu0 0.0
  %620 = vmatprep.subr.mxu0 0.0
  %621 = vmatpush1.msra.mxu0 0.0
  %622 = vmatprep.subr.mxu0 0.0
  %623 = vmatpush1.msra.mxu0 0.0
  %624 = vmatprep.mubr.f32.mxu0 0.0
  %625 = vmatmul.mubr.f32.gmra.mrb[0].mxu0 %v558
  %v626 = vpop.f32.mrb[0].mxu0
  %v627 = vadd.f32 %v554, %v626
  %v628 = vpop.f32.mrb[0].mxu0
  %v629 = vadd.f32 %v554, %v628
  %630 = vdwg.mxu0
  %v631 = vmax.f32 %v627, 0.0
  %v632 = vmax.f32 %v629, 0.0
  %633 = vst [vmem:[%s5] sm:$0xff] %v631
  %634 = vst [vmem:[%s5 + $0x8] sm:$0xff] %v632
  %v635 = vld [vmem:[%s1] sm:$0xff]
  %s636 = scalar_lea.vmem %s0, 8
  %v637 = vld [vmem:[%s636] sm:$0xff]
  %639 = vrot.lane.b32.xlu0 %v637, 17
  %v640 = vpop.permute.xlu0 %639
  %v641 = vrot.slane %v640, 4
  %v642 = vsel %vm24, %v641, %v640
  %645 = vst.msk [vmem:[#allocation2] sm:$0xff] %vm70, %v642
  %646 = vst.msk [vmem:[#allocation2 + $0x8] sm:$0xf] %vm20, %v641
  %v647 = vld [vmem:[#allocation2] sm:$0xff]
  %v649 = vcombine.high %v647, %v647
  %v651 = vsel %vm76, %v647, 0.0
  %v652 = vsel %vm77, %v649, 0.0
  %653 = vst [vmem:[#allocation3] sm:$0xf] %v651
  %654 = vst [vmem:[#allocation3 + $0x8] sm:$0xf] %v652
  %v655 = vld [vmem:[#allocation2] sm:$0xff]
  %v656 = vld [vmem:[#allocation2 + $0x8] sm:$0xf]
  %v659 = vcombine.low %v655, %v655
  %v660 = vcombine.low %v656, %v656
  %661 = vrot.lane.b32.xlu0 %v659, 127
  %v662 = vpop.permute.xlu0 %661
  %663 = vrot.lane.b32.xlu0 %v655, 127
  %v664 = vpop.permute.xlu0 %663
  %665 = vrot.lane.b32.xlu0 %v660, 127
  %v666 = vpop.permute.xlu0 %665
  %v667 = vsel %vm97, %v662, %v664
  %v668 = vsel %vm97, %v664, %v666
  %671 = vst [vmem:[#allocation3] sm:$0xf0] %v667
  %672 = vst [vmem:[#allocation3 + $0x8] sm:$0xf0] %v668
  %v673 = vld [vmem:[#allocation2] sm:$0xff]
  %v674 = vld [vmem:[#allocation2 + $0x8] sm:$0xf]
  %v677 = vcombine.high %v673, %v673
  %678 = vrot.lane.b32.xlu0 %v673, 126
  %v679 = vpop.permute.xlu0 %678
  %680 = vrot.lane.b32.xlu0 %v677, 126
  %v681 = vpop.permute.xlu0 %680
  %682 = vrot.lane.b32.xlu0 %v674, 126
  %v683 = vpop.permute.xlu0 %682
  %v684 = vsel %vm119, %v679, %v681
  %v685 = vsel %vm119, %v681, %v683
  %v688 = vsel %vm108, %v684, 0.0
  %v689 = vsel %vm109, %v685, 0.0
  %690 = vst [vmem:[#allocation3 + $0x10] sm:$0xf] %v688
  %691 = vst [vmem:[#allocation3 + $0x18] sm:$0xf] %v689
  %v692 = vld [vmem:[#allocation2] sm:$0xff]
  %v693 = vld [vmem:[#allocation2 + $0x8] sm:$0xf]
  %v696 = vcombine.high %v692, %v692
  %697 = vrot.lane.b32.xlu0 %v692, 112
  %v698 = vpop.permute.xlu0 %697
  %699 = vrot.lane.b32.xlu0 %v696, 112
  %v700 = vpop.permute.xlu0 %699
  %701 = vrot.lane.b32.xlu0 %v693, 112
  %v702 = vpop.permute.xlu0 %701
  %v703 = vsel %vm139, %v698, %v700
  %v704 = vsel %vm139, %v700, %v702
  %v707 = vsel %vm76, %v703, 0.0
  %v708 = vsel %vm77, %v704, 0.0
  %v711 = vrot.slane %v707, 4
  %v712 = vrot.slane %v708, 4
  %715 = vst [vmem:[#allocation3 + $0x10] sm:$0xf0] %v711
  %716 = vst [vmem:[#allocation3 + $0x18] sm:$0xf0] %v712
  %v717 = vld [vmem:[#allocation2] sm:$0xff]
  %v718 = vld [vmem:[#allocation2 + $0x8] sm:$0xf]
  %v721 = vcombine.high %v717, %v717
  %722 = vrot.lane.b32.xlu0 %v717, 111
  %v723 = vpop.permute.xlu0 %722
  %724 = vrot.lane.b32.xlu0 %v721, 111
  %v725 = vpop.permute.xlu0 %724
  %726 = vrot.lane.b32.xlu0 %v718, 111
  %v727 = vpop.permute.xlu0 %726
  %v728 = vsel %vm165, %v723, %v725
  %v729 = vsel %vm165, %v725, %v727
  %732 = vst [vmem:[#allocation3 + $0x20] sm:$0xf] %v728
  %733 = vst [vmem:[#allocation3 + $0x28] sm:$0xf] %v729
  %v734 = vld [vmem:[#allocation2] sm:$0xff]
  %v735 = vld [vmem:[#allocation2 + $0x8] sm:$0xf]
  %v738 = vcombine.high %v734, %v734
  %739 = vrot.lane.b32.xlu0 %v734, 110
  %v740 = vpop.permute.xlu0 %739
  %741 = vrot.lane.b32.xlu0 %v738, 110
  %v742 = vpop.permute.xlu0 %741
  %743 = vrot.lane.b32.xlu0 %v735, 110
  %v744 = vpop.permute.xlu0 %743
  %v745 = vsel %vm183, %v740, %v742
  %v746 = vsel %vm183, %v742, %v744
  %v749 = vsel %vm108, %v745, 0.0
  %v750 = vsel %vm109, %v746, 0.0
  %v753 = vrot.slane %v749, 4
  %v754 = vrot.slane %v750, 4
  %757 = vst [vmem:[#allocation3 + $0x20] sm:$0xf0] %v753
  %758 = vst [vmem:[#allocation3 + $0x28] sm:$0xf0] %v754
  %v759 = vld [vmem:[#allocation2] sm:$0xff]
  %v760 = vld [vmem:[#allocation2 + $0x8] sm:$0xf]
  %v763 = vcombine.high %v759, %v759
  %764 = vrot.lane.b32.xlu0 %v759, 96
  %v765 = vpop.permute.xlu0 %764
  %766 = vrot.lane.b32.xlu0 %v763, 96
  %v767 = vpop.permute.xlu0 %766
  %768 = vrot.lane.b32.xlu0 %v760, 96
  %v769 = vpop.permute.xlu0 %768
  %v770 = vsel %vm209, %v765, %v767
  %v771 = vsel %vm209, %v767, %v769
  %v774 = vsel %vm76, %v770, 0.0
  %v775 = vsel %vm77, %v771, 0.0
  %776 = vst [vmem:[#allocation3 + $0x30] sm:$0xf] %v774
  %777 = vst [vmem:[#allocation3 + $0x38] sm:$0xf] %v775
  %v778 = vld [vmem:[#allocation2] sm:$0xff]
  %v779 = vld [vmem:[#allocation2 + $0x8] sm:$0xf]
  %v782 = vcombine.low %v778, %v778
  %v783 = vcombine.low %v779, %v779
  %784 = vrot.lane.b32.xlu0 %v782, 95
  %v785 = vpop.permute.xlu0 %784
  %786 = vrot.lane.b32.xlu0 %v778, 95
  %v787 = vpop.permute.xlu0 %786
  %788 = vrot.lane.b32.xlu0 %v783, 95
  %v789 = vpop.permute.xlu0 %788
  %v790 = vsel %vm230, %v785, %v787
  %v791 = vsel %vm230, %v787, %v789
  %794 = vst [vmem:[#allocation3 + $0x30] sm:$0xf0] %v790
  %795 = vst [vmem:[#allocation3 + $0x38] sm:$0xf0] %v791
  %v796 = vld [vmem:[#allocation2] sm:$0xff]
  %v797 = vld [vmem:[#allocation2 + $0x8] sm:$0xf]
  %v800 = vcombine.high %v796, %v796
  %801 = vrot.lane.b32.xlu0 %v796, 94
  %v802 = vpop.permute.xlu0 %801
  %803 = vrot.lane.b32.xlu0 %v800, 94
  %v804 = vpop.permute.xlu0 %803
  %805 = vrot.lane.b32.xlu0 %v797, 94
  %v806 = vpop.permute.xlu0 %805
  %v807 = vsel %vm248, %v802, %v804
  %v808 = vsel %vm248, %v804, %v806
  %v811 = vsel %vm108, %v807, 0.0
  %v812 = vsel %vm109, %v808, 0.0
  %813 = vst [vmem:[#allocation3 + $0x40] sm:$0xf] %v811
  %814 = vst [vmem:[#allocation3 + $0x48] sm:$0xf] %v812
  %v815 = vld [vmem:[#allocation3] sm:$0xff]
  %v816 = vld [vmem:[#allocation3 + $0x8] sm:$0xff]
  %v817 = vld [vmem:[#allocation3 + $0x10] sm:$0xff]
  %v818 = vld [vmem:[#allocation3 + $0x18] sm:$0xff]
  %v819 = vld [vmem:[#allocation3 + $0x20] sm:$0xff]
  %v820 = vld [vmem:[#allocation3 + $0x28] sm:$0xff]
  %v821 = vld [vmem:[#allocation3 + $0x30] sm:$0xff]
  %v822 = vld [vmem:[#allocation3 + $0x38] sm:$0xff]
  %v823 = vld [vmem:[#allocation3 + $0x40] sm:$0xf]
  %v824 = vld [vmem:[#allocation3 + $0x48] sm:$0xf]
  %v825 = vld [vmem:[%s2] sm:$0xff]
  %827 = vset.pattern.permute.xlu0 0
  %828 = vperm.xlu0 %827, %v825
  %v829 = vpop.permute.xlu0 %828
  %v832 = vsel %vm273, %v635, 0
  %v835 = vsel %vm277, %v823, 0
  %v838 = vsel %vm277, %v824, 0
  %840 = vmatprep.subr.mxu0 %v816
  %841 = vmatpush1.msra.mxu0 %v815
  %842 = vmatprep.subr.mxu0 %v818
  %843 = vmatpush1.msra.mxu0 %v817
  %844 = vmatprep.subr.mxu0 %v820
  %845 = vmatpush1.msra.mxu0 %v819
  %846 = vmatprep.subr.mxu0 %v822
  %847 = vmatpush1.msra.mxu0 %v821
  %848 = vmatprep.subr.mxu0 %v838
  %849 = vmatpush1.msra.mxu0 %v835
  %850 = vmatprep.subr.mxu0 0.0
  %851 = vmatpush1.msra.mxu0 0.0
  %852 = vmatprep.subr.mxu0 0.0
  %853 = vmatpush1.msra.mxu0 0.0
  %854 = vmatprep.subr.mxu0 0.0
  %855 = vmatpush1.msra.mxu0 0.0
  %856 = vmatprep.subr.mxu0 0.0
  %857 = vmatpush1.msra.mxu0 0.0
  %858 = vmatprep.subr.mxu0 0.0
  %859 = vmatpush1.msra.mxu0 0.0
  %860 = vmatprep.subr.mxu0 0.0
  %861 = vmatpush1.msra.mxu0 0.0
  %862 = vmatprep.subr.mxu0 0.0
  %863 = vmatpush1.msra.mxu0 0.0
  %864 = vmatprep.subr.mxu0 0.0
  %865 = vmatpush1.msra.mxu0 0.0
  %866 = vmatprep.subr.mxu0 0.0
  %867 = vmatpush1.msra.mxu0 0.0
  %868 = vmatprep.subr.mxu0 0.0
  %869 = vmatpush1.msra.mxu0 0.0
  %870 = vmatprep.subr.mxu0 0.0
  %871 = vmatpush1.msra.mxu0 0.0
  %872 = vmatprep.subr.mxu0 0.0
  %873 = vmatpush1.msra.mxu0 0.0
  %874 = vmatprep.subr.mxu0 0.0
  %875 = vmatpush1.msra.mxu0 0.0
  %876 = vmatprep.subr.mxu0 0.0
  %877 = vmatpush1.msra.mxu0 0.0
  %878 = vmatprep.subr.mxu0 0.0
  %879 = vmatpush1.msra.mxu0 0.0
  %880 = vmatprep.subr.mxu0 0.0
  %881 = vmatpush1.msra.mxu0 0.0
  %882 = vmatprep.subr.mxu0 0.0
  %883 = vmatpush1.msra.mxu0 0.0
  %884 = vmatprep.subr.mxu0 0.0
  %885 = vmatpush1.msra.mxu0 0.0
  %886 = vmatprep.subr.mxu0 0.0
  %887 = vmatpush1.msra.mxu0 0.0
  %888 = vmatprep.subr.mxu0 0.0
  %889 = vmatpush1.msra.mxu0 0.0
  %890 = vmatprep.subr.mxu0 0.0
  %891 = vmatpush1.msra.mxu0 0.0
  %892 = vmatprep.subr.mxu0 0.0
  %893 = vmatpush1.msra.mxu0 0.0
  %894 = vmatprep.subr.mxu0 0.0
  %895 = vmatpush1.msra.mxu0 0.0
  %896 = vmatprep.subr.mxu0 0.0
  %897 = vmatpush1.msra.mxu0 0.0
  %898 = vmatprep.subr.mxu0 0.0
  %899 = vmatpush1.msra.mxu0 0.0
  %900 = vmatprep.subr.mxu0 0.0
  %901 = vmatpush1.msra.mxu0 0.0
  %902 = vmatprep.subr.mxu0 0.0
  %903 = vmatpush1.msra.mxu0 0.0
  %904 = vmatprep.mubr.f32.mxu0 0.0
  %905 = vmatmul.mubr.f32.gmra.mrb[0].mxu0 %v832
  %v906 = vpop.f32.mrb[0].mxu0
  %v907 = vadd.f32 %v829, %v906
  %v908 = vpop.f32.mrb[0].mxu0
  %v909 = vadd.f32 %v829, %v908
  %910 = vdwg.mxu0
  %v911 = vmax.f32 %v907, 0.0
  %v912 = vmax.f32 %v909, 0.0
  %v913 = vld [vmem:[%s3] sm:$0xff]
  %916 = vrot.lane.b32.xlu0 %v911, 17
  %v917 = vpop.permute.xlu0 %916
  %918 = vrot.lane.b32.xlu0 %v912, 17
  %v919 = vpop.permute.xlu0 %918
  %v920 = vsel %vm24, %v917, %v919
  %924 = vst.msk [vmem:[#allocation4] sm:$0xff] %vm368, %v917
  %925 = vst [vmem:[#allocation4 + $0x8] sm:$0xff] %v920
  %926 = vst.msk [vmem:[#allocation4 + $0x10] sm:$0xff] %vm24, %v919
  %v927 = vld [vmem:[#allocation4] sm:$0xff]
  %v928 = vld [vmem:[#allocation4 + $0x8] sm:$0xff]
  %v929 = vsel %vm76, %v927, 0.0
  %v930 = vsel %vm77, %v928, 0.0
  %931 = vst [vmem:[#allocation5] sm:$0xff] %v929
  %932 = vst [vmem:[#allocation5 + $0x8] sm:$0xff] %v930
  %v933 = vld [vmem:[#allocation4] sm:$0xff]
  %v934 = vld [vmem:[#allocation4 + $0x8] sm:$0xff]
  %v935 = vld [vmem:[#allocation4 + $0x10] sm:$0xff]
  %939 = vrot.lane.b32.xlu0 %v933, 127
  %v940 = vpop.permute.xlu0 %939
  %941 = vrot.lane.b32.xlu0 %v934, 127
  %v942 = vpop.permute.xlu0 %941
  %943 = vrot.lane.b32.xlu0 %v935, 127
  %v944 = vpop.permute.xlu0 %943
  %v945 = vsel %vm97, %v940, %v942
  %v946 = vsel %vm97, %v942, %v944
  %949 = vst [vmem:[#allocation5 + $0x10] sm:$0xff] %v945
  %950 = vst [vmem:[#allocation5 + $0x18] sm:$0xff] %v946
  %v951 = vld [vmem:[#allocation4] sm:$0xff]
  %v952 = vld [vmem:[#allocation4 + $0x8] sm:$0xff]
  %v953 = vld [vmem:[#allocation4 + $0x10] sm:$0xff]
  %957 = vrot.lane.b32.xlu0 %v951, 126
  %v958 = vpop.permute.xlu0 %957
  %959 = vrot.lane.b32.xlu0 %v952, 126
  %v960 = vpop.permute.xlu0 %959
  %961 = vrot.lane.b32.xlu0 %v953, 126
  %v962 = vpop.permute.xlu0 %961
  %v963 = vsel %vm119, %v958, %v960
  %v964 = vsel %vm119, %v960, %v962
  %v967 = vsel %vm108, %v963, 0.0
  %v968 = vsel %vm109, %v964, 0.0
  %969 = vst [vmem:[#allocation5 + $0x20] sm:$0xff] %v967
  %970 = vst [vmem:[#allocation5 + $0x28] sm:$0xff] %v968
  %v971 = vld [vmem:[#allocation4] sm:$0xff]
  %v972 = vld [vmem:[#allocation4 + $0x8] sm:$0xff]
  %v973 = vld [vmem:[#allocation4 + $0x10] sm:$0xff]
  %977 = vrot.lane.b32.xlu0 %v971, 112
  %v978 = vpop.permute.xlu0 %977
  %979 = vrot.lane.b32.xlu0 %v972, 112
  %v980 = vpop.permute.xlu0 %979
  %981 = vrot.lane.b32.xlu0 %v973, 112
  %v982 = vpop.permute.xlu0 %981
  %v983 = vsel %vm139, %v978, %v980
  %v984 = vsel %vm139, %v980, %v982
  %v987 = vsel %vm76, %v983, 0.0
  %v988 = vsel %vm77, %v984, 0.0
  %989 = vst [vmem:[#allocation5 + $0x30] sm:$0xff] %v987
  %990 = vst [vmem:[#allocation5 + $0x38] sm:$0xff] %v988
  %v991 = vld [vmem:[#allocation4] sm:$0xff]
  %v992 = vld [vmem:[#allocation4 + $0x8] sm:$0xff]
  %v993 = vld [vmem:[#allocation4 + $0x10] sm:$0xff]
  %997 = vrot.lane.b32.xlu0 %v991, 111
  %v998 = vpop.permute.xlu0 %997
  %999 = vrot.lane.b32.xlu0 %v992, 111
  %v1000 = vpop.permute.xlu0 %999
  %1001 = vrot.lane.b32.xlu0 %v993, 111
  %v1002 = vpop.permute.xlu0 %1001
  %v1003 = vsel %vm165, %v998, %v1000
  %v1004 = vsel %vm165, %v1000, %v1002
  %1007 = vst [vmem:[#allocation5 + $0x40] sm:$0xff] %v1003
  %1008 = vst [vmem:[#allocation5 + $0x48] sm:$0xff] %v1004
  %v1009 = vld [vmem:[#allocation4] sm:$0xff]
  %v1010 = vld [vmem:[#allocation4 + $0x8] sm:$0xff]
  %v1011 = vld [vmem:[#allocation4 + $0x10] sm:$0xff]
  %1015 = vrot.lane.b32.xlu0 %v1009, 110
  %v1016 = vpop.permute.xlu0 %1015
  %1017 = vrot.lane.b32.xlu0 %v1010, 110
  %v1018 = vpop.permute.xlu0 %1017
  %1019 = vrot.lane.b32.xlu0 %v1011, 110
  %v1020 = vpop.permute.xlu0 %1019
  %v1021 = vsel %vm183, %v1016, %v1018
  %v1022 = vsel %vm183, %v1018, %v1020
  %v1025 = vsel %vm108, %v1021, 0.0
  %v1026 = vsel %vm109, %v1022, 0.0
  %1027 = vst [vmem:[#allocation5 + $0x50] sm:$0xff] %v1025
  %1028 = vst [vmem:[#allocation5 + $0x58] sm:$0xff] %v1026
  %v1029 = vld [vmem:[#allocation4] sm:$0xff]
  %v1030 = vld [vmem:[#allocation4 + $0x8] sm:$0xff]
  %v1031 = vld [vmem:[#allocation4 + $0x10] sm:$0xff]
  %1035 = vrot.lane.b32.xlu0 %v1029, 96
  %v1036 = vpop.permute.xlu0 %1035
  %1037 = vrot.lane.b32.xlu0 %v1030, 96
  %v1038 = vpop.permute.xlu0 %1037
  %1039 = vrot.lane.b32.xlu0 %v1031, 96
  %v1040 = vpop.permute.xlu0 %1039
  %v1041 = vsel %vm209, %v1036, %v1038
  %v1042 = vsel %vm209, %v1038, %v1040
  %v1045 = vsel %vm76, %v1041, 0.0
  %v1046 = vsel %vm77, %v1042, 0.0
  %1047 = vst [vmem:[#allocation5 + $0x60] sm:$0xff] %v1045
  %1048 = vst [vmem:[#allocation5 + $0x68] sm:$0xff] %v1046
  %v1049 = vld [vmem:[#allocation4] sm:$0xff]
  %v1050 = vld [vmem:[#allocation4 + $0x8] sm:$0xff]
  %v1051 = vld [vmem:[#allocation4 + $0x10] sm:$0xff]
  %1055 = vrot.lane.b32.xlu0 %v1049, 95
  %v1056 = vpop.permute.xlu0 %1055
  %1057 = vrot.lane.b32.xlu0 %v1050, 95
  %v1058 = vpop.permute.xlu0 %1057
  %1059 = vrot.lane.b32.xlu0 %v1051, 95
  %v1060 = vpop.permute.xlu0 %1059
  %v1061 = vsel %vm230, %v1056, %v1058
  %v1062 = vsel %vm230, %v1058, %v1060
  %1065 = vst [vmem:[#allocation5 + $0x70] sm:$0xff] %v1061
  %1066 = vst [vmem:[#allocation5 + $0x78] sm:$0xff] %v1062
  %v1067 = vld [vmem:[#allocation4] sm:$0xff]
  %v1068 = vld [vmem:[#allocation4 + $0x8] sm:$0xff]
  %v1069 = vld [vmem:[#allocation4 + $0x10] sm:$0xff]
  %1073 = vrot.lane.b32.xlu0 %v1067, 94
  %v1074 = vpop.permute.xlu0 %1073
  %1075 = vrot.lane.b32.xlu0 %v1068, 94
  %v1076 = vpop.permute.xlu0 %1075
  %1077 = vrot.lane.b32.xlu0 %v1069, 94
  %v1078 = vpop.permute.xlu0 %1077
  %v1079 = vsel %vm248, %v1074, %v1076
  %v1080 = vsel %vm248, %v1076, %v1078
  %v1083 = vsel %vm108, %v1079, 0.0
  %v1084 = vsel %vm109, %v1080, 0.0
  %1085 = vst [vmem:[#allocation5 + $0x80] sm:$0xff] %v1083
  %1086 = vst [vmem:[#allocation5 + $0x88] sm:$0xff] %v1084
  %v1087 = vld [vmem:[#allocation5] sm:$0xff]
  %v1088 = vld [vmem:[#allocation5 + $0x8] sm:$0xff]
  %v1089 = vld [vmem:[#allocation5 + $0x10] sm:$0xff]
  %v1090 = vld [vmem:[#allocation5 + $0x18] sm:$0xff]
  %v1091 = vld [vmem:[#allocation5 + $0x20] sm:$0xff]
  %v1092 = vld [vmem:[#allocation5 + $0x28] sm:$0xff]
  %v1093 = vld [vmem:[#allocation5 + $0x30] sm:$0xff]
  %v1094 = vld [vmem:[#allocation5 + $0x38] sm:$0xff]
  %v1095 = vld [vmem:[#allocation5 + $0x40] sm:$0xff]
  %v1096 = vld [vmem:[#allocation5 + $0x48] sm:$0xff]
  %v1097 = vld [vmem:[#allocation5 + $0x50] sm:$0xff]
  %v1098 = vld [vmem:[#allocation5 + $0x58] sm:$0xff]
  %v1099 = vld [vmem:[#allocation5 + $0x60] sm:$0xff]
  %v1100 = vld [vmem:[#allocation5 + $0x68] sm:$0xff]
  %v1101 = vld [vmem:[#allocation5 + $0x70] sm:$0xff]
  %v1102 = vld [vmem:[#allocation5 + $0x78] sm:$0xff]
  %v1103 = vld [vmem:[#allocation5 + $0x80] sm:$0xff]
  %v1104 = vld [vmem:[#allocation5 + $0x88] sm:$0xff]
  %v1105 = vld [vmem:[%s4] sm:$0xff]
  %1107 = vset.pattern.permute.xlu0 0
  %1108 = vperm.xlu0 %1107, %v1105
  %v1109 = vpop.permute.xlu0 %1108
  %v1112 = vsel %vm556, %v913, 0
  %1114 = vmatprep.subr.mxu0 %v1088
  %1115 = vmatpush1.msra.mxu0 %v1087
  %1116 = vmatprep.subr.mxu0 %v1090
  %1117 = vmatpush1.msra.mxu0 %v1089
  %1118 = vmatprep.subr.mxu0 %v1092
  %1119 = vmatpush1.msra.mxu0 %v1091
  %1120 = vmatprep.subr.mxu0 %v1094
  %1121 = vmatpush1.msra.mxu0 %v1093
  %1122 = vmatprep.subr.mxu0 %v1096
  %1123 = vmatpush1.msra.mxu0 %v1095
  %1124 = vmatprep.subr.mxu0 %v1098
  %1125 = vmatpush1.msra.mxu0 %v1097
  %1126 = vmatprep.subr.mxu0 %v1100
  %1127 = vmatpush1.msra.mxu0 %v1099
  %1128 = vmatprep.subr.mxu0 %v1102
  %1129 = vmatpush1.msra.mxu0 %v1101
  %1130 = vmatprep.subr.mxu0 %v1104
  %1131 = vmatpush1.msra.mxu0 %v1103
  %1132 = vmatprep.subr.mxu0 0.0
  %1133 = vmatpush1.msra.mxu0 0.0
  %1134 = vmatprep.subr.mxu0 0.0
  %1135 = vmatpush1.msra.mxu0 0.0
  %1136 = vmatprep.subr.mxu0 0.0
  %1137 = vmatpush1.msra.mxu0 0.0
  %1138 = vmatprep.subr.mxu0 0.0
  %1139 = vmatpush1.msra.mxu0 0.0
  %1140 = vmatprep.subr.mxu0 0.0
  %1141 = vmatpush1.msra.mxu0 0.0
  %1142 = vmatprep.subr.mxu0 0.0
  %1143 = vmatpush1.msra.mxu0 0.0
  %1144 = vmatprep.subr.mxu0 0.0
  %1145 = vmatpush1.msra.mxu0 0.0
  %1146 = vmatprep.subr.mxu0 0.0
  %1147 = vmatpush1.msra.mxu0 0.0
  %1148 = vmatprep.subr.mxu0 0.0
  %1149 = vmatpush1.msra.mxu0 0.0
  %1150 = vmatprep.subr.mxu0 0.0
  %1151 = vmatpush1.msra.mxu0 0.0
  %1152 = vmatprep.subr.mxu0 0.0
  %1153 = vmatpush1.msra.mxu0 0.0
  %1154 = vmatprep.subr.mxu0 0.0
  %1155 = vmatpush1.msra.mxu0 0.0
  %1156 = vmatprep.subr.mxu0 0.0
  %1157 = vmatpush1.msra.mxu0 0.0
  %1158 = vmatprep.subr.mxu0 0.0
  %1159 = vmatpush1.msra.mxu0 0.0
  %1160 = vmatprep.subr.mxu0 0.0
  %1161 = vmatpush1.msra.mxu0 0.0
  %1162 = vmatprep.subr.mxu0 0.0
  %1163 = vmatpush1.msra.mxu0 0.0
  %1164 = vmatprep.subr.mxu0 0.0
  %1165 = vmatpush1.msra.mxu0 0.0
  %1166 = vmatprep.subr.mxu0 0.0
  %1167 = vmatpush1.msra.mxu0 0.0
  %1168 = vmatprep.subr.mxu0 0.0
  %1169 = vmatpush1.msra.mxu0 0.0
  %1170 = vmatprep.subr.mxu0 0.0
  %1171 = vmatpush1.msra.mxu0 0.0
  %1172 = vmatprep.subr.mxu0 0.0
  %1173 = vmatpush1.msra.mxu0 0.0
  %1174 = vmatprep.subr.mxu0 0.0
  %1175 = vmatpush1.msra.mxu0 0.0
  %1176 = vmatprep.subr.mxu0 0.0
  %1177 = vmatpush1.msra.mxu0 0.0
  %1178 = vmatprep.mubr.f32.mxu0 0.0
  %1179 = vmatmul.mubr.f32.gmra.mrb[0].mxu0 %v1112
  %v1180 = vpop.f32.mrb[0].mxu0
  %v1181 = vadd.f32 %v1109, %v1180
  %v1182 = vpop.f32.mrb[0].mxu0
  %v1183 = vadd.f32 %v1109, %v1182
  %1184 = vdwg.mxu0
  %v1185 = vmax.f32 %v1181, 0.0
  %v1186 = vmax.f32 %v1183, 0.0
  %s1187 = scalar_lea.vmem %s5, 16
  %1188 = vst [vmem:[%s1187] sm:$0xff] %v1185
  %1189 = vst [vmem:[%s1187 + $0x8] sm:$0xff] %v1186
  // Predicated region
  $region22: #{two_conv_forward.1} parent=0 // pred_check
    _
  $region23: #{two_conv_forward.1} parent=0 // pred_check_branch
    %1191 = sbr.rel (0) target = $region25
  $region24: #{two_conv_forward.1} parent=0 // pred_region
    _
  $region25: #{two_conv_forward.1} parent=0 // pred_fallthru
    _
  // Predicated region
  $region26: #{two_conv_forward.1} parent=0 // pred_check
    _
  $region27: #{two_conv_forward.1} parent=0 // pred_check_branch
    %1193 = sbr.rel (0) target = $region29
  $region28: #{two_conv_forward.1} parent=0 // pred_region
    _
  $region29: #{two_conv_forward.1} parent=0 // pred_fallthru
    _

</llo_original>
